<compile_context>
chip_gen: v5e
topology: v5e:2x2
jax: 0.10.0
libtpu: 0.0.40
codegen_flags: <defaults>
</compile_context>

<pallas_src>
import functools

import jax
import jax.numpy as jnp
from jax.experimental import pallas as pl
from jax.experimental.pallas import tpu as pltpu

NI = 4                      # input channels
NF = 8                      # filters per branch
KS = [39, 19, 9]            # kernel sizes (40 // 2**i, made odd)
EPS = 1e-5


def _inception_kernel(x_ref, wb_ref, wall_ref, wmp_ref, g_ref, beta_ref,
                      out_ref, xbpad_ref, stack_ref,
                      *, B, ni, nf, L, kmax, maxpad):
    """Fused inception module forward.

    x_ref     : (B, ni, L)            raw input (NCL)
    wb_ref    : (nf, ni)              bottleneck 1x1 conv weight
    wall_ref  : (3*nf, kmax*nf)       combined, zero-padded, tap-major branch weights
    wmp_ref   : (nf, ni)              1x1 conv after maxpool
    g_ref     : (4*nf, 1)             BN gamma
    beta_ref  : (4*nf, 1)             BN beta
    out_ref   : (4*nf, B*L)           lane-dense output (channel, batch*length)
    xbpad_ref : (B, nf, L+2*maxpad)   scratch: per-element zero-padded bottleneck
    stack_ref : (kmax*nf, B*L)        scratch: im2col stack
    """
    BL = B * L

    # ---- flatten batch into lanes: x2d[c, b*L + l] = x[b, c, l] ----------------
    x2d = jnp.concatenate([x_ref[b] for b in range(B)], axis=1)            # (ni, BL)

    # ---- bottleneck 1x1 conv for the whole batch (one matmul, N = B*L) ---------
    bott = jnp.dot(wb_ref[...], x2d, preferred_element_type=jnp.float32)   # (nf, BL)

    # ---- per-batch-element zero-padded bottleneck (halo = maxpad each side) ----
    xbpad_ref[...] = jnp.zeros_like(xbpad_ref)
    for b in range(B):
        xbpad_ref[b, :, maxpad:maxpad + L] = bott[:, b * L:(b + 1) * L]

    # ---- im2col: stack[tap*nf + c, b*L + l] = xbpad[b, c, tap + l] -------------
    for tap in range(kmax):                                  # static unroll, lane-dense stores
        stack_ref[tap * nf:(tap + 1) * nf, :] = jnp.concatenate(
            [xbpad_ref[b, :, tap:tap + L] for b in range(B)], axis=1)

    # ---- all three 'same' branch convs as ONE fat matmul (M=3nf, K=kmax*nf) ----
    conv = jnp.dot(wall_ref[...], stack_ref[...],
                   preferred_element_type=jnp.float32)                     # (3nf, BL)

    # ---- maxpool(3, stride=1, pad=1) + 1x1 conv on the raw input ---------------
    # Edge/batch-boundary handling via an in-kernel position mask (no wrapper pad).
    pos = jax.lax.broadcasted_iota(jnp.int32, (ni, BL), 1) % L
    left_shift = jnp.concatenate([x2d[:, :1], x2d[:, :BL - 1]], axis=1)    # x2d[g-1]
    right_shift = jnp.concatenate([x2d[:, 1:], x2d[:, BL - 1:]], axis=1)   # x2d[g+1]
    left = jnp.where(pos == 0, x2d, left_shift)       # no left neighbor at l == 0
    right = jnp.where(pos == L - 1, x2d, right_shift)  # no right neighbor at l == L-1
    pooled = jnp.maximum(jnp.maximum(left, x2d), right)
    mp = jnp.dot(wmp_ref[...], pooled, preferred_element_type=jnp.float32)  # (nf, BL)

    # ---- fused training-mode BatchNorm1d + ReLU (per-channel stats over B*L) ---
    inv_n = 1.0 / float(BL)

    def bn_relu(y, g, b):
        mean = jnp.sum(y, axis=1, keepdims=True) * inv_n
        cent = y - mean
        var = jnp.sum(cent * cent, axis=1, keepdims=True) * inv_n          # biased var
        return jnp.maximum(cent * jax.lax.rsqrt(var + EPS) * g + b, 0.0)

    # Channel order matches torch concat: [conv39, conv19, conv9, maxconvpool].
    out_ref[0:3 * nf, :] = bn_relu(conv, g_ref[0:3 * nf, :], beta_ref[0:3 * nf, :])
    out_ref[3 * nf:4 * nf, :] = bn_relu(mp, g_ref[3 * nf:4 * nf, :],
                                        beta_ref[3 * nf:4 * nf, :])


def inception_module(x, params, *, nf=NF, ks=tuple(KS)):
    B, ni, L = x.shape
    maxpad = max(k // 2 for k in ks)
    kmax = 2 * maxpad + 1
    Lp = L + 2 * maxpad
    C = 4 * nf

    # Combined tap-major im2col weight: zero-pad each branch's taps to kmax, stack
    # branches along output channels, reorder to (out, tap, in) and flatten K.
    blocks = []
    for name, k in zip(("w_conv0", "w_conv1", "w_conv2"), ks):
        p = maxpad - k // 2
        blocks.append(jnp.pad(params[name], ((0, 0), (0, 0), (p, p))))     # (nf, nf, kmax)
    w_all = jnp.concatenate(blocks, axis=0)                                # (3nf, nf, kmax)
    w_all = jnp.transpose(w_all, (0, 2, 1)).reshape(3 * nf, kmax * nf)
    w_all = w_all.astype(jnp.float32)

    gamma = params["bn_gamma"].reshape(C, 1).astype(jnp.float32)
    beta = params["bn_beta"].reshape(C, 1).astype(jnp.float32)

    kern = functools.partial(_inception_kernel, B=B, ni=ni, nf=nf, L=L,
                             kmax=kmax, maxpad=maxpad)

    # Whole problem (tens of KB) fits in VMEM on v5e/v6e/v7x -> single invocation,
    # full-array blocks, no grid-step overhead.
    out_flat = pl.pallas_call(
        kern,
        out_shape=jax.ShapeDtypeStruct((C, B * L), jnp.float32),
        scratch_shapes=[
            pltpu.VMEM((B, nf, Lp), jnp.float32),          # padded bottleneck
            pltpu.VMEM((kmax * nf, B * L), jnp.float32),   # im2col stack
        ],
    )(x, params["w_bottleneck"], w_all, params["w_maxconv"], gamma, beta)

    # Lane-dense kernel layout (C, B*L) -> PyTorch (B, C, L).
    return out_flat.reshape(C, B, L).transpose(1, 0, 2)


def _reference(x, params, nf=NF, ks=KS):
    """Pure-JAX reference of the torch module's forward (training-mode BN)."""
    B, ni, L = x.shape
    bott = jnp.einsum("oc,bcl->bol", params["w_bottleneck"], x)
    outs = []
    for name, k in zip(("w_conv0", "w_conv1", "w_conv2"), ks):
        w = params[name]
        p = k // 2
        bp = jnp.pad(bott, ((0, 0), (0, 0), (p, p)))
        y = sum(jnp.einsum("oc,bcl->bol", w[:, :, dk], bp[:, :, dk:dk + L])
                for dk in range(k))
        outs.append(y)
    xp = jnp.pad(x, ((0, 0), (0, 0), (1, 1)), constant_values=-jnp.inf)
    pooled = jnp.maximum(jnp.maximum(xp[:, :, 0:L], xp[:, :, 1:L + 1]), xp[:, :, 2:L + 2])
    outs.append(jnp.einsum("oc,bcl->bol", params["w_maxconv"], pooled))
    y = jnp.concatenate(outs, axis=1)
    mean = y.mean(axis=(0, 2), keepdims=True)
    var = ((y - mean) ** 2).mean(axis=(0, 2), keepdims=True)
    yn = (y - mean) / jnp.sqrt(var + EPS)
    yn = yn * params["bn_gamma"].reshape(1, -1, 1) + params["bn_beta"].reshape(1, -1, 1)
    return jnp.maximum(yn, 0.0)


if __name__ == "__main__":
    key = jax.random.PRNGKey(0)
    kx, kb, k0, k1, k2, km = jax.random.split(key, 6)

    B, L = 2, 64
    x = jax.random.normal(kx, (B, NI, L), jnp.float32)

    params = {
        "w_bottleneck": 0.1 * jax.random.normal(kb, (NF, NI), jnp.float32),
        "w_conv0": 0.1 * jax.random.normal(k0, (NF, NF, KS[0]), jnp.float32),
        "w_conv1": 0.1 * jax.random.normal(k1, (NF, NF, KS[1]), jnp.float32),
        "w_conv2": 0.1 * jax.random.normal(k2, (NF, NF, KS[2]), jnp.float32),
        "w_maxconv": 0.1 * jax.random.normal(km, (NF, NI), jnp.float32),
        # PyTorch BatchNorm1d defaults: weight = 1, bias = 0
        "bn_gamma": jnp.ones((4 * NF,), jnp.float32),
        "bn_beta": jnp.zeros((4 * NF,), jnp.float32),
    }

    out = jax.jit(inception_module)(x, params)
    jax.block_until_ready(out)
    assert out.shape == (B, 4 * NF, L), out.shape
    assert bool(jnp.all(out >= 0.0))                      # ReLU post-condition

    ref = _reference(x, params)
    assert bool(jnp.allclose(out, ref, atol=1e-4, rtol=1e-4))
    print("KERNEL_OK")
</pallas_src>

<mosaic_0001>
module attributes {stable_mosaic.version = 11 : i64} {
  func.func @_inception_kernel(%arg0: memref<2x4x64xf32, #tpu.memory_space<vmem>>, %arg1: memref<8x4xf32, #tpu.memory_space<vmem>>, %arg2: memref<24x312xf32, #tpu.memory_space<vmem>>, %arg3: memref<8x4xf32, #tpu.memory_space<vmem>>, %arg4: memref<32x1xf32, #tpu.memory_space<vmem>>, %arg5: memref<32x1xf32, #tpu.memory_space<vmem>>, %arg6: memref<32x128xf32, #tpu.memory_space<vmem>>, %arg7: memref<2x8x102xf32, #tpu.memory_space<vmem>>, %arg8: memref<312x128xf32, #tpu.memory_space<vmem>>) attributes {dimension_semantics = [], scalar_prefetch = 0 : i64, scratch_operands = 2 : i64, tpu.core_type = #tpu.core_type<tc>} {
    %c0 = arith.constant 0 : index
    %c0_0 = arith.constant 0 : index
    %c0_1 = arith.constant 0 : index
    %0 = vector.load %arg0[%c0, %c0_0, %c0_1] : memref<2x4x64xf32, #tpu.memory_space<vmem>>, vector<1x4x64xf32>
    %1 = vector.shape_cast %0 : vector<1x4x64xf32> to vector<4x64xf32>
    %c1 = arith.constant 1 : index
    %c0_2 = arith.constant 0 : index
    %c0_3 = arith.constant 0 : index
    %2 = vector.load %arg0[%c1, %c0_2, %c0_3] : memref<2x4x64xf32, #tpu.memory_space<vmem>>, vector<1x4x64xf32>
    %3 = vector.shape_cast %2 : vector<1x4x64xf32> to vector<4x64xf32>
    %4 = tpu.concatenate %1, %3 in 1 : vector<4x64xf32>, vector<4x64xf32> -> vector<4x128xf32>
    %c0_4 = arith.constant 0 : index
    %c0_5 = arith.constant 0 : index
    %5 = vector.load %arg1[%c0_4, %c0_5] : memref<8x4xf32, #tpu.memory_space<vmem>>, vector<8x4xf32>
    %cst = arith.constant dense<0.000000e+00> : vector<8x128xf32>
    %6 = tpu.matmul %5, %4, %cst {dimension_numbers = #tpu.dot_dimension_numbers<[1], [0], [0], [1], [0, 0, 1, 1], [], []>} : vector<8x4xf32>, vector<4x128xf32>, vector<8x128xf32> -> vector<8x128xf32>
    %cst_6 = arith.constant 0.000000e+00 : f32
    %7 = vector.broadcast %cst_6 : f32 to vector<2x8x102xf32>
    %c0_7 = arith.constant 0 : index
    %c0_8 = arith.constant 0 : index
    %c0_9 = arith.constant 0 : index
    %8 = vector.load %arg7[%c0_7, %c0_8, %c0_9] : memref<2x8x102xf32, #tpu.memory_space<vmem>>, vector<2x8x102xf32>
    tpu.vector_store %arg7[%c0_7, %c0_8, %c0_9], %7 {strides = array<i32>} : memref<2x8x102xf32, #tpu.memory_space<vmem>>, vector<2x8x102xf32>,
    %9 = vector.extract_strided_slice %6 {offsets = [0, 0], sizes = [8, 64], strides = [1, 1]} : vector<8x128xf32> to vector<8x64xf32>
    %c0_10 = arith.constant 0 : index
    %c0_11 = arith.constant 0 : index
    %c19 = arith.constant 19 : index
    %10 = vector.load %arg7[%c0_10, %c0_11, %c19] : memref<2x8x102xf32, #tpu.memory_space<vmem>>, vector<1x8x64xf32>
    %11 = vector.shape_cast %10 : vector<1x8x64xf32> to vector<8x64xf32>
    %12 = vector.shape_cast %9 : vector<8x64xf32> to vector<1x8x64xf32>
    tpu.vector_store %arg7[%c0_10, %c0_11, %c19], %12 {strides = array<i32>} : memref<2x8x102xf32, #tpu.memory_space<vmem>>, vector<1x8x64xf32>,
    %13 = vector.extract_strided_slice %6 {offsets = [0, 64], sizes = [8, 64], strides = [1, 1]} : vector<8x128xf32> to vector<8x64xf32>
    %c1_12 = arith.constant 1 : index
    %c0_13 = arith.constant 0 : index
    %c19_14 = arith.constant 19 : index
    %14 = vector.load %arg7[%c1_12, %c0_13, %c19_14] : memref<2x8x102xf32, #tpu.memory_space<vmem>>, vector<1x8x64xf32>
    %15 = vector.shape_cast %14 : vector<1x8x64xf32> to vector<8x64xf32>
    %16 = vector.shape_cast %13 : vector<8x64xf32> to vector<1x8x64xf32>
    tpu.vector_store %arg7[%c1_12, %c0_13, %c19_14], %16 {strides = array<i32>} : memref<2x8x102xf32, #tpu.memory_space<vmem>>, vector<1x8x64xf32>,
    %c0_15 = arith.constant 0 : index
    %c0_16 = arith.constant 0 : index
    %c0_17 = arith.constant 0 : index
    %17 = vector.load %arg7[%c0_15, %c0_16, %c0_17] : memref<2x8x102xf32, #tpu.memory_space<vmem>>, vector<1x8x64xf32>
    %18 = vector.shape_cast %17 : vector<1x8x64xf32> to vector<8x64xf32>
    %c1_18 = arith.constant 1 : index
    %c0_19 = arith.constant 0 : index
    %c0_20 = arith.constant 0 : index
    %19 = vector.load %arg7[%c1_18, %c0_19, %c0_20] : memref<2x8x102xf32, #tpu.memory_space<vmem>>, vector<1x8x64xf32>
    %20 = vector.shape_cast %19 : vector<1x8x64xf32> to vector<8x64xf32>
    %21 = tpu.concatenate %18, %20 in 1 : vector<8x64xf32>, vector<8x64xf32> -> vector<8x128xf32>
    %c0_21 = arith.constant 0 : index
    %c0_22 = arith.constant 0 : index
    %22 = vector.load %arg8[%c0_21, %c0_22] : memref<312x128xf32, #tpu.memory_space<vmem>>, vector<8x128xf32>
    tpu.vector_store %arg8[%c0_21, %c0_22], %21 {strides = array<i32>} : memref<312x128xf32, #tpu.memory_space<vmem>>, vector<8x128xf32>,
    %c0_23 = arith.constant 0 : index
    %c0_24 = arith.constant 0 : index
    %c1_25 = arith.constant 1 : index
    %23 = vector.load %arg7[%c0_23, %c0_24, %c1_25] : memref<2x8x102xf32, #tpu.memory_space<vmem>>, vector<1x8x64xf32>
    %24 = vector.shape_cast %23 : vector<1x8x64xf32> to vector<8x64xf32>
    %c1_26 = arith.constant 1 : index
    %c0_27 = arith.constant 0 : index
    %c1_28 = arith.constant 1 : index
    %25 = vector.load %arg7[%c1_26, %c0_27, %c1_28] : memref<2x8x102xf32, #tpu.memory_space<vmem>>, vector<1x8x64xf32>
    %26 = vector.shape_cast %25 : vector<1x8x64xf32> to vector<8x64xf32>
    %27 = tpu.concatenate %24, %26 in 1 : vector<8x64xf32>, vector<8x64xf32> -> vector<8x128xf32>
    %c8 = arith.constant 8 : index
    %c0_29 = arith.constant 0 : index
    %28 = vector.load %arg8[%c8, %c0_29] : memref<312x128xf32, #tpu.memory_space<vmem>>, vector<8x128xf32>
    tpu.vector_store %arg8[%c8, %c0_29], %27 {strides = array<i32>} : memref<312x128xf32, #tpu.memory_space<vmem>>, vector<8x128xf32>,
    %c0_30 = arith.constant 0 : index
    %c0_31 = arith.constant 0 : index
    %c2 = arith.constant 2 : index
    %29 = vector.load %arg7[%c0_30, %c0_31, %c2] : memref<2x8x102xf32, #tpu.memory_space<vmem>>, vector<1x8x64xf32>
    %30 = vector.shape_cast %29 : vector<1x8x64xf32> to vector<8x64xf32>
    %c1_32 = arith.constant 1 : index
    %c0_33 = arith.constant 0 : index
    %c2_34 = arith.constant 2 : index
    %31 = vector.load %arg7[%c1_32, %c0_33, %c2_34] : memref<2x8x102xf32, #tpu.memory_space<vmem>>, vector<1x8x64xf32>
    %32 = vector.shape_cast %31 : vector<1x8x64xf32> to vector<8x64xf32>
    %33 = tpu.concatenate %30, %32 in 1 : vector<8x64xf32>, vector<8x64xf32> -> vector<8x128xf32>
    %c16 = arith.constant 16 : index
    %c0_35 = arith.constant 0 : index
    %34 = vector.load %arg8[%c16, %c0_35] : memref<312x128xf32, #tpu.memory_space<vmem>>, vector<8x128xf32>
    tpu.vector_store %arg8[%c16, %c0_35], %33 {strides = array<i32>} : memref<312x128xf32, #tpu.memory_space<vmem>>, vector<8x128xf32>,
    %c0_36 = arith.constant 0 : index
    %c0_37 = arith.constant 0 : index
    %c3 = arith.constant 3 : index
    %35 = vector.load %arg7[%c0_36, %c0_37, %c3] : memref<2x8x102xf32, #tpu.memory_space<vmem>>, vector<1x8x64xf32>
    %36 = vector.shape_cast %35 : vector<1x8x64xf32> to vector<8x64xf32>
    %c1_38 = arith.constant 1 : index
    %c0_39 = arith.constant 0 : index
    %c3_40 = arith.constant 3 : index
    %37 = vector.load %arg7[%c1_38, %c0_39, %c3_40] : memref<2x8x102xf32, #tpu.memory_space<vmem>>, vector<1x8x64xf32>
    %38 = vector.shape_cast %37 : vector<1x8x64xf32> to vector<8x64xf32>
    %39 = tpu.concatenate %36, %38 in 1 : vector<8x64xf32>, vector<8x64xf32> -> vector<8x128xf32>
    %c24 = arith.constant 24 : index
    %c0_41 = arith.constant 0 : index
    %40 = vector.load %arg8[%c24, %c0_41] : memref<312x128xf32, #tpu.memory_space<vmem>>, vector<8x128xf32>
    tpu.vector_store %arg8[%c24, %c0_41], %39 {strides = array<i32>} : memref<312x128xf32, #tpu.memory_space<vmem>>, vector<8x128xf32>,
    %c0_42 = arith.constant 0 : index
    %c0_43 = arith.constant 0 : index
    %c4 = arith.constant 4 : index
    %41 = vector.load %arg7[%c0_42, %c0_43, %c4] : memref<2x8x102xf32, #tpu.memory_space<vmem>>, vector<1x8x64xf32>
    %42 = vector.shape_cast %41 : vector<1x8x64xf32> to vector<8x64xf32>
    %c1_44 = arith.constant 1 : index
    %c0_45 = arith.constant 0 : index
    %c4_46 = arith.constant 4 : index
    %43 = vector.load %arg7[%c1_44, %c0_45, %c4_46] : memref<2x8x102xf32, #tpu.memory_space<vmem>>, vector<1x8x64xf32>
    %44 = vector.shape_cast %43 : vector<1x8x64xf32> to vector<8x64xf32>
    %45 = tpu.concatenate %42, %44 in 1 : vector<8x64xf32>, vector<8x64xf32> -> vector<8x128xf32>
    %c32 = arith.constant 32 : index
    %c0_47 = arith.constant 0 : index
    %46 = vector.load %arg8[%c32, %c0_47] : memref<312x128xf32, #tpu.memory_space<vmem>>, vector<8x128xf32>
    tpu.vector_store %arg8[%c32, %c0_47], %45 {strides = array<i32>} : memref<312x128xf32, #tpu.memory_space<vmem>>, vector<8x128xf32>,
    %c0_48 = arith.constant 0 : index
    %c0_49 = arith.constant 0 : index
    %c5 = arith.constant 5 : index
    %47 = vector.load %arg7[%c0_48, %c0_49, %c5] : memref<2x8x102xf32, #tpu.memory_space<vmem>>, vector<1x8x64xf32>
    %48 = vector.shape_cast %47 : vector<1x8x64xf32> to vector<8x64xf32>
    %c1_50 = arith.constant 1 : index
    %c0_51 = arith.constant 0 : index
    %c5_52 = arith.constant 5 : index
    %49 = vector.load %arg7[%c1_50, %c0_51, %c5_52] : memref<2x8x102xf32, #tpu.memory_space<vmem>>, vector<1x8x64xf32>
    %50 = vector.shape_cast %49 : vector<1x8x64xf32> to vector<8x64xf32>
    %51 = tpu.concatenate %48, %50 in 1 : vector<8x64xf32>, vector<8x64xf32> -> vector<8x128xf32>
    %c40 = arith.constant 40 : index
    %c0_53 = arith.constant 0 : index
    %52 = vector.load %arg8[%c40, %c0_53] : memref<312x128xf32, #tpu.memory_space<vmem>>, vector<8x128xf32>
    tpu.vector_store %arg8[%c40, %c0_53], %51 {strides = array<i32>} : memref<312x128xf32, #tpu.memory_space<vmem>>, vector<8x128xf32>,
    %c0_54 = arith.constant 0 : index
    %c0_55 = arith.constant 0 : index
    %c6 = arith.constant 6 : index
    %53 = vector.load %arg7[%c0_54, %c0_55, %c6] : memref<2x8x102xf32, #tpu.memory_space<vmem>>, vector<1x8x64xf32>
    %54 = vector.shape_cast %53 : vector<1x8x64xf32> to vector<8x64xf32>
    %c1_56 = arith.constant 1 : index
    %c0_57 = arith.constant 0 : index
    %c6_58 = arith.constant 6 : index
    %55 = vector.load %arg7[%c1_56, %c0_57, %c6_58] : memref<2x8x102xf32, #tpu.memory_space<vmem>>, vector<1x8x64xf32>
    %56 = vector.shape_cast %55 : vector<1x8x64xf32> to vector<8x64xf32>
    %57 = tpu.concatenate %54, %56 in 1 : vector<8x64xf32>, vector<8x64xf32> -> vector<8x128xf32>
    %c48 = arith.constant 48 : index
    %c0_59 = arith.constant 0 : index
    %58 = vector.load %arg8[%c48, %c0_59] : memref<312x128xf32, #tpu.memory_space<vmem>>, vector<8x128xf32>
    tpu.vector_store %arg8[%c48, %c0_59], %57 {strides = array<i32>} : memref<312x128xf32, #tpu.memory_space<vmem>>, vector<8x128xf32>,
    %c0_60 = arith.constant 0 : index
    %c0_61 = arith.constant 0 : index
    %c7 = arith.constant 7 : index
    %59 = vector.load %arg7[%c0_60, %c0_61, %c7] : memref<2x8x102xf32, #tpu.memory_space<vmem>>, vector<1x8x64xf32>
    %60 = vector.shape_cast %59 : vector<1x8x64xf32> to vector<8x64xf32>
    %c1_62 = arith.constant 1 : index
    %c0_63 = arith.constant 0 : index
    %c7_64 = arith.constant 7 : index
    %61 = vector.load %arg7[%c1_62, %c0_63, %c7_64] : memref<2x8x102xf32, #tpu.memory_space<vmem>>, vector<1x8x64xf32>
    %62 = vector.shape_cast %61 : vector<1x8x64xf32> to vector<8x64xf32>
    %63 = tpu.concatenate %60, %62 in 1 : vector<8x64xf32>, vector<8x64xf32> -> vector<8x128xf32>
    %c56 = arith.constant 56 : index
    %c0_65 = arith.constant 0 : index
    %64 = vector.load %arg8[%c56, %c0_65] : memref<312x128xf32, #tpu.memory_space<vmem>>, vector<8x128xf32>
    tpu.vector_store %arg8[%c56, %c0_65], %63 {strides = array<i32>} : memref<312x128xf32, #tpu.memory_space<vmem>>, vector<8x128xf32>,
    %c0_66 = arith.constant 0 : index
    %c0_67 = arith.constant 0 : index
    %c8_68 = arith.constant 8 : index
    %65 = vector.load %arg7[%c0_66, %c0_67, %c8_68] : memref<2x8x102xf32, #tpu.memory_space<vmem>>, vector<1x8x64xf32>
    %66 = vector.shape_cast %65 : vector<1x8x64xf32> to vector<8x64xf32>
    %c1_69 = arith.constant 1 : index
    %c0_70 = arith.constant 0 : index
    %c8_71 = arith.constant 8 : index
    %67 = vector.load %arg7[%c1_69, %c0_70, %c8_71] : memref<2x8x102xf32, #tpu.memory_space<vmem>>, vector<1x8x64xf32>
    %68 = vector.shape_cast %67 : vector<1x8x64xf32> to vector<8x64xf32>
    %69 = tpu.concatenate %66, %68 in 1 : vector<8x64xf32>, vector<8x64xf32> -> vector<8x128xf32>
    %c64 = arith.constant 64 : index
    %c0_72 = arith.constant 0 : index
    %70 = vector.load %arg8[%c64, %c0_72] : memref<312x128xf32, #tpu.memory_space<vmem>>, vector<8x128xf32>
    tpu.vector_store %arg8[%c64, %c0_72], %69 {strides = array<i32>} : memref<312x128xf32, #tpu.memory_space<vmem>>, vector<8x128xf32>,
    %c0_73 = arith.constant 0 : index
    %c0_74 = arith.constant 0 : index
    %c9 = arith.constant 9 : index
    %71 = vector.load %arg7[%c0_73, %c0_74, %c9] : memref<2x8x102xf32, #tpu.memory_space<vmem>>, vector<1x8x64xf32>
    %72 = vector.shape_cast %71 : vector<1x8x64xf32> to vector<8x64xf32>
    %c1_75 = arith.constant 1 : index
    %c0_76 = arith.constant 0 : index
    %c9_77 = arith.constant 9 : index
    %73 = vector.load %arg7[%c1_75, %c0_76, %c9_77] : memref<2x8x102xf32, #tpu.memory_space<vmem>>, vector<1x8x64xf32>
    %74 = vector.shape_cast %73 : vector<1x8x64xf32> to vector<8x64xf32>
    %75 = tpu.concatenate %72, %74 in 1 : vector<8x64xf32>, vector<8x64xf32> -> vector<8x128xf32>
    %c72 = arith.constant 72 : index
    %c0_78 = arith.constant 0 : index
    %76 = vector.load %arg8[%c72, %c0_78] : memref<312x128xf32, #tpu.memory_space<vmem>>, vector<8x128xf32>
    tpu.vector_store %arg8[%c72, %c0_78], %75 {strides = array<i32>} : memref<312x128xf32, #tpu.memory_space<vmem>>, vector<8x128xf32>,
    %c0_79 = arith.constant 0 : index
    %c0_80 = arith.constant 0 : index
    %c10 = arith.constant 10 : index
    %77 = vector.load %arg7[%c0_79, %c0_80, %c10] : memref<2x8x102xf32, #tpu.memory_space<vmem>>, vector<1x8x64xf32>
    %78 = vector.shape_cast %77 : vector<1x8x64xf32> to vector<8x64xf32>
    %c1_81 = arith.constant 1 : index
    %c0_82 = arith.constant 0 : index
    %c10_83 = arith.constant 10 : index
    %79 = vector.load %arg7[%c1_81, %c0_82, %c10_83] : memref<2x8x102xf32, #tpu.memory_space<vmem>>, vector<1x8x64xf32>
    %80 = vector.shape_cast %79 : vector<1x8x64xf32> to vector<8x64xf32>
    %81 = tpu.concatenate %78, %80 in 1 : vector<8x64xf32>, vector<8x64xf32> -> vector<8x128xf32>
    %c80 = arith.constant 80 : index
    %c0_84 = arith.constant 0 : index
    %82 = vector.load %arg8[%c80, %c0_84] : memref<312x128xf32, #tpu.memory_space<vmem>>, vector<8x128xf32>
    tpu.vector_store %arg8[%c80, %c0_84], %81 {strides = array<i32>} : memref<312x128xf32, #tpu.memory_space<vmem>>, vector<8x128xf32>,
    %c0_85 = arith.constant 0 : index
    %c0_86 = arith.constant 0 : index
    %c11 = arith.constant 11 : index
    %83 = vector.load %arg7[%c0_85, %c0_86, %c11] : memref<2x8x102xf32, #tpu.memory_space<vmem>>, vector<1x8x64xf32>
    %84 = vector.shape_cast %83 : vector<1x8x64xf32> to vector<8x64xf32>
    %c1_87 = arith.constant 1 : index
    %c0_88 = arith.constant 0 : index
    %c11_89 = arith.constant 11 : index
    %85 = vector.load %arg7[%c1_87, %c0_88, %c11_89] : memref<2x8x102xf32, #tpu.memory_space<vmem>>, vector<1x8x64xf32>
    %86 = vector.shape_cast %85 : vector<1x8x64xf32> to vector<8x64xf32>
    %87 = tpu.concatenate %84, %86 in 1 : vector<8x64xf32>, vector<8x64xf32> -> vector<8x128xf32>
    %c88 = arith.constant 88 : index
    %c0_90 = arith.constant 0 : index
    %88 = vector.load %arg8[%c88, %c0_90] : memref<312x128xf32, #tpu.memory_space<vmem>>, vector<8x128xf32>
    tpu.vector_store %arg8[%c88, %c0_90], %87 {strides = array<i32>} : memref<312x128xf32, #tpu.memory_space<vmem>>, vector<8x128xf32>,
    %c0_91 = arith.constant 0 : index
    %c0_92 = arith.constant 0 : index
    %c12 = arith.constant 12 : index
    %89 = vector.load %arg7[%c0_91, %c0_92, %c12] : memref<2x8x102xf32, #tpu.memory_space<vmem>>, vector<1x8x64xf32>
    %90 = vector.shape_cast %89 : vector<1x8x64xf32> to vector<8x64xf32>
    %c1_93 = arith.constant 1 : index
    %c0_94 = arith.constant 0 : index
    %c12_95 = arith.constant 12 : index
    %91 = vector.load %arg7[%c1_93, %c0_94, %c12_95] : memref<2x8x102xf32, #tpu.memory_space<vmem>>, vector<1x8x64xf32>
    %92 = vector.shape_cast %91 : vector<1x8x64xf32> to vector<8x64xf32>
    %93 = tpu.concatenate %90, %92 in 1 : vector<8x64xf32>, vector<8x64xf32> -> vector<8x128xf32>
    %c96 = arith.constant 96 : index
    %c0_96 = arith.constant 0 : index
    %94 = vector.load %arg8[%c96, %c0_96] : memref<312x128xf32, #tpu.memory_space<vmem>>, vector<8x128xf32>
    tpu.vector_store %arg8[%c96, %c0_96], %93 {strides = array<i32>} : memref<312x128xf32, #tpu.memory_space<vmem>>, vector<8x128xf32>,
    %c0_97 = arith.constant 0 : index
    %c0_98 = arith.constant 0 : index
    %c13 = arith.constant 13 : index
    %95 = vector.load %arg7[%c0_97, %c0_98, %c13] : memref<2x8x102xf32, #tpu.memory_space<vmem>>, vector<1x8x64xf32>
    %96 = vector.shape_cast %95 : vector<1x8x64xf32> to vector<8x64xf32>
    %c1_99 = arith.constant 1 : index
    %c0_100 = arith.constant 0 : index
    %c13_101 = arith.constant 13 : index
    %97 = vector.load %arg7[%c1_99, %c0_100, %c13_101] : memref<2x8x102xf32, #tpu.memory_space<vmem>>, vector<1x8x64xf32>
    %98 = vector.shape_cast %97 : vector<1x8x64xf32> to vector<8x64xf32>
    %99 = tpu.concatenate %96, %98 in 1 : vector<8x64xf32>, vector<8x64xf32> -> vector<8x128xf32>
    %c104 = arith.constant 104 : index
    %c0_102 = arith.constant 0 : index
    %100 = vector.load %arg8[%c104, %c0_102] : memref<312x128xf32, #tpu.memory_space<vmem>>, vector<8x128xf32>
    tpu.vector_store %arg8[%c104, %c0_102], %99 {strides = array<i32>} : memref<312x128xf32, #tpu.memory_space<vmem>>, vector<8x128xf32>,
    %c0_103 = arith.constant 0 : index
    %c0_104 = arith.constant 0 : index
    %c14 = arith.constant 14 : index
    %101 = vector.load %arg7[%c0_103, %c0_104, %c14] : memref<2x8x102xf32, #tpu.memory_space<vmem>>, vector<1x8x64xf32>
    %102 = vector.shape_cast %101 : vector<1x8x64xf32> to vector<8x64xf32>
    %c1_105 = arith.constant 1 : index
    %c0_106 = arith.constant 0 : index
    %c14_107 = arith.constant 14 : index
    %103 = vector.load %arg7[%c1_105, %c0_106, %c14_107] : memref<2x8x102xf32, #tpu.memory_space<vmem>>, vector<1x8x64xf32>
    %104 = vector.shape_cast %103 : vector<1x8x64xf32> to vector<8x64xf32>
    %105 = tpu.concatenate %102, %104 in 1 : vector<8x64xf32>, vector<8x64xf32> -> vector<8x128xf32>
    %c112 = arith.constant 112 : index
    %c0_108 = arith.constant 0 : index
    %106 = vector.load %arg8[%c112, %c0_108] : memref<312x128xf32, #tpu.memory_space<vmem>>, vector<8x128xf32>
    tpu.vector_store %arg8[%c112, %c0_108], %105 {strides = array<i32>} : memref<312x128xf32, #tpu.memory_space<vmem>>, vector<8x128xf32>,
    %c0_109 = arith.constant 0 : index
    %c0_110 = arith.constant 0 : index
    %c15 = arith.constant 15 : index
    %107 = vector.load %arg7[%c0_109, %c0_110, %c15] : memref<2x8x102xf32, #tpu.memory_space<vmem>>, vector<1x8x64xf32>
    %108 = vector.shape_cast %107 : vector<1x8x64xf32> to vector<8x64xf32>
    %c1_111 = arith.constant 1 : index
    %c0_112 = arith.constant 0 : index
    %c15_113 = arith.constant 15 : index
    %109 = vector.load %arg7[%c1_111, %c0_112, %c15_113] : memref<2x8x102xf32, #tpu.memory_space<vmem>>, vector<1x8x64xf32>
    %110 = vector.shape_cast %109 : vector<1x8x64xf32> to vector<8x64xf32>
    %111 = tpu.concatenate %108, %110 in 1 : vector<8x64xf32>, vector<8x64xf32> -> vector<8x128xf32>
    %c120 = arith.constant 120 : index
    %c0_114 = arith.constant 0 : index
    %112 = vector.load %arg8[%c120, %c0_114] : memref<312x128xf32, #tpu.memory_space<vmem>>, vector<8x128xf32>
    tpu.vector_store %arg8[%c120, %c0_114], %111 {strides = array<i32>} : memref<312x128xf32, #tpu.memory_space<vmem>>, vector<8x128xf32>,
    %c0_115 = arith.constant 0 : index
    %c0_116 = arith.constant 0 : index
    %c16_117 = arith.constant 16 : index
    %113 = vector.load %arg7[%c0_115, %c0_116, %c16_117] : memref<2x8x102xf32, #tpu.memory_space<vmem>>, vector<1x8x64xf32>
    %114 = vector.shape_cast %113 : vector<1x8x64xf32> to vector<8x64xf32>
    %c1_118 = arith.constant 1 : index
    %c0_119 = arith.constant 0 : index
    %c16_120 = arith.constant 16 : index
    %115 = vector.load %arg7[%c1_118, %c0_119, %c16_120] : memref<2x8x102xf32, #tpu.memory_space<vmem>>, vector<1x8x64xf32>
    %116 = vector.shape_cast %115 : vector<1x8x64xf32> to vector<8x64xf32>
    %117 = tpu.concatenate %114, %116 in 1 : vector<8x64xf32>, vector<8x64xf32> -> vector<8x128xf32>
    %c128 = arith.constant 128 : index
    %c0_121 = arith.constant 0 : index
    %118 = vector.load %arg8[%c128, %c0_121] : memref<312x128xf32, #tpu.memory_space<vmem>>, vector<8x128xf32>
    tpu.vector_store %arg8[%c128, %c0_121], %117 {strides = array<i32>} : memref<312x128xf32, #tpu.memory_space<vmem>>, vector<8x128xf32>,
    %c0_122 = arith.constant 0 : index
    %c0_123 = arith.constant 0 : index
    %c17 = arith.constant 17 : index
    %119 = vector.load %arg7[%c0_122, %c0_123, %c17] : memref<2x8x102xf32, #tpu.memory_space<vmem>>, vector<1x8x64xf32>
    %120 = vector.shape_cast %119 : vector<1x8x64xf32> to vector<8x64xf32>
    %c1_124 = arith.constant 1 : index
    %c0_125 = arith.constant 0 : index
    %c17_126 = arith.constant 17 : index
    %121 = vector.load %arg7[%c1_124, %c0_125, %c17_126] : memref<2x8x102xf32, #tpu.memory_space<vmem>>, vector<1x8x64xf32>
    %122 = vector.shape_cast %121 : vector<1x8x64xf32> to vector<8x64xf32>
    %123 = tpu.concatenate %120, %122 in 1 : vector<8x64xf32>, vector<8x64xf32> -> vector<8x128xf32>
    %c136 = arith.constant 136 : index
    %c0_127 = arith.constant 0 : index
    %124 = vector.load %arg8[%c136, %c0_127] : memref<312x128xf32, #tpu.memory_space<vmem>>, vector<8x128xf32>
    tpu.vector_store %arg8[%c136, %c0_127], %123 {strides = array<i32>} : memref<312x128xf32, #tpu.memory_space<vmem>>, vector<8x128xf32>,
    %c0_128 = arith.constant 0 : index
    %c0_129 = arith.constant 0 : index
    %c18 = arith.constant 18 : index
    %125 = vector.load %arg7[%c0_128, %c0_129, %c18] : memref<2x8x102xf32, #tpu.memory_space<vmem>>, vector<1x8x64xf32>
    %126 = vector.shape_cast %125 : vector<1x8x64xf32> to vector<8x64xf32>
    %c1_130 = arith.constant 1 : index
    %c0_131 = arith.constant 0 : index
    %c18_132 = arith.constant 18 : index
    %127 = vector.load %arg7[%c1_130, %c0_131, %c18_132] : memref<2x8x102xf32, #tpu.memory_space<vmem>>, vector<1x8x64xf32>
    %128 = vector.shape_cast %127 : vector<1x8x64xf32> to vector<8x64xf32>
    %129 = tpu.concatenate %126, %128 in 1 : vector<8x64xf32>, vector<8x64xf32> -> vector<8x128xf32>
    %c144 = arith.constant 144 : index
    %c0_133 = arith.constant 0 : index
    %130 = vector.load %arg8[%c144, %c0_133] : memref<312x128xf32, #tpu.memory_space<vmem>>, vector<8x128xf32>
    tpu.vector_store %arg8[%c144, %c0_133], %129 {strides = array<i32>} : memref<312x128xf32, #tpu.memory_space<vmem>>, vector<8x128xf32>,
    %c0_134 = arith.constant 0 : index
    %c0_135 = arith.constant 0 : index
    %c19_136 = arith.constant 19 : index
    %131 = vector.load %arg7[%c0_134, %c0_135, %c19_136] : memref<2x8x102xf32, #tpu.memory_space<vmem>>, vector<1x8x64xf32>
    %132 = vector.shape_cast %131 : vector<1x8x64xf32> to vector<8x64xf32>
    %c1_137 = arith.constant 1 : index
    %c0_138 = arith.constant 0 : index
    %c19_139 = arith.constant 19 : index
    %133 = vector.load %arg7[%c1_137, %c0_138, %c19_139] : memref<2x8x102xf32, #tpu.memory_space<vmem>>, vector<1x8x64xf32>
    %134 = vector.shape_cast %133 : vector<1x8x64xf32> to vector<8x64xf32>
    %135 = tpu.concatenate %132, %134 in 1 : vector<8x64xf32>, vector<8x64xf32> -> vector<8x128xf32>
    %c152 = arith.constant 152 : index
    %c0_140 = arith.constant 0 : index
    %136 = vector.load %arg8[%c152, %c0_140] : memref<312x128xf32, #tpu.memory_space<vmem>>, vector<8x128xf32>
    tpu.vector_store %arg8[%c152, %c0_140], %135 {strides = array<i32>} : memref<312x128xf32, #tpu.memory_space<vmem>>, vector<8x128xf32>,
    %c0_141 = arith.constant 0 : index
    %c0_142 = arith.constant 0 : index
    %c20 = arith.constant 20 : index
    %137 = vector.load %arg7[%c0_141, %c0_142, %c20] : memref<2x8x102xf32, #tpu.memory_space<vmem>>, vector<1x8x64xf32>
    %138 = vector.shape_cast %137 : vector<1x8x64xf32> to vector<8x64xf32>
    %c1_143 = arith.constant 1 : index
    %c0_144 = arith.constant 0 : index
    %c20_145 = arith.constant 20 : index
    %139 = vector.load %arg7[%c1_143, %c0_144, %c20_145] : memref<2x8x102xf32, #tpu.memory_space<vmem>>, vector<1x8x64xf32>
    %140 = vector.shape_cast %139 : vector<1x8x64xf32> to vector<8x64xf32>
    %141 = tpu.concatenate %138, %140 in 1 : vector<8x64xf32>, vector<8x64xf32> -> vector<8x128xf32>
    %c160 = arith.constant 160 : index
    %c0_146 = arith.constant 0 : index
    %142 = vector.load %arg8[%c160, %c0_146] : memref<312x128xf32, #tpu.memory_space<vmem>>, vector<8x128xf32>
    tpu.vector_store %arg8[%c160, %c0_146], %141 {strides = array<i32>} : memref<312x128xf32, #tpu.memory_space<vmem>>, vector<8x128xf32>,
    %c0_147 = arith.constant 0 : index
    %c0_148 = arith.constant 0 : index
    %c21 = arith.constant 21 : index
    %143 = vector.load %arg7[%c0_147, %c0_148, %c21] : memref<2x8x102xf32, #tpu.memory_space<vmem>>, vector<1x8x64xf32>
    %144 = vector.shape_cast %143 : vector<1x8x64xf32> to vector<8x64xf32>
    %c1_149 = arith.constant 1 : index
    %c0_150 = arith.constant 0 : index
    %c21_151 = arith.constant 21 : index
    %145 = vector.load %arg7[%c1_149, %c0_150, %c21_151] : memref<2x8x102xf32, #tpu.memory_space<vmem>>, vector<1x8x64xf32>
    %146 = vector.shape_cast %145 : vector<1x8x64xf32> to vector<8x64xf32>
    %147 = tpu.concatenate %144, %146 in 1 : vector<8x64xf32>, vector<8x64xf32> -> vector<8x128xf32>
    %c168 = arith.constant 168 : index
    %c0_152 = arith.constant 0 : index
    %148 = vector.load %arg8[%c168, %c0_152] : memref<312x128xf32, #tpu.memory_space<vmem>>, vector<8x128xf32>
    tpu.vector_store %arg8[%c168, %c0_152], %147 {strides = array<i32>} : memref<312x128xf32, #tpu.memory_space<vmem>>, vector<8x128xf32>,
    %c0_153 = arith.constant 0 : index
    %c0_154 = arith.constant 0 : index
    %c22 = arith.constant 22 : index
    %149 = vector.load %arg7[%c0_153, %c0_154, %c22] : memref<2x8x102xf32, #tpu.memory_space<vmem>>, vector<1x8x64xf32>
    %150 = vector.shape_cast %149 : vector<1x8x64xf32> to vector<8x64xf32>
    %c1_155 = arith.constant 1 : index
    %c0_156 = arith.constant 0 : index
    %c22_157 = arith.constant 22 : index
    %151 = vector.load %arg7[%c1_155, %c0_156, %c22_157] : memref<2x8x102xf32, #tpu.memory_space<vmem>>, vector<1x8x64xf32>
    %152 = vector.shape_cast %151 : vector<1x8x64xf32> to vector<8x64xf32>
    %153 = tpu.concatenate %150, %152 in 1 : vector<8x64xf32>, vector<8x64xf32> -> vector<8x128xf32>
    %c176 = arith.constant 176 : index
    %c0_158 = arith.constant 0 : index
    %154 = vector.load %arg8[%c176, %c0_158] : memref<312x128xf32, #tpu.memory_space<vmem>>, vector<8x128xf32>
    tpu.vector_store %arg8[%c176, %c0_158], %153 {strides = array<i32>} : memref<312x128xf32, #tpu.memory_space<vmem>>, vector<8x128xf32>,
    %c0_159 = arith.constant 0 : index
    %c0_160 = arith.constant 0 : index
    %c23 = arith.constant 23 : index
    %155 = vector.load %arg7[%c0_159, %c0_160, %c23] : memref<2x8x102xf32, #tpu.memory_space<vmem>>, vector<1x8x64xf32>
    %156 = vector.shape_cast %155 : vector<1x8x64xf32> to vector<8x64xf32>
    %c1_161 = arith.constant 1 : index
    %c0_162 = arith.constant 0 : index
    %c23_163 = arith.constant 23 : index
    %157 = vector.load %arg7[%c1_161, %c0_162, %c23_163] : memref<2x8x102xf32, #tpu.memory_space<vmem>>, vector<1x8x64xf32>
    %158 = vector.shape_cast %157 : vector<1x8x64xf32> to vector<8x64xf32>
    %159 = tpu.concatenate %156, %158 in 1 : vector<8x64xf32>, vector<8x64xf32> -> vector<8x128xf32>
    %c184 = arith.constant 184 : index
    %c0_164 = arith.constant 0 : index
    %160 = vector.load %arg8[%c184, %c0_164] : memref<312x128xf32, #tpu.memory_space<vmem>>, vector<8x128xf32>
    tpu.vector_store %arg8[%c184, %c0_164], %159 {strides = array<i32>} : memref<312x128xf32, #tpu.memory_space<vmem>>, vector<8x128xf32>,
    %c0_165 = arith.constant 0 : index
    %c0_166 = arith.constant 0 : index
    %c24_167 = arith.constant 24 : index
    %161 = vector.load %arg7[%c0_165, %c0_166, %c24_167] : memref<2x8x102xf32, #tpu.memory_space<vmem>>, vector<1x8x64xf32>
    %162 = vector.shape_cast %161 : vector<1x8x64xf32> to vector<8x64xf32>
    %c1_168 = arith.constant 1 : index
    %c0_169 = arith.constant 0 : index
    %c24_170 = arith.constant 24 : index
    %163 = vector.load %arg7[%c1_168, %c0_169, %c24_170] : memref<2x8x102xf32, #tpu.memory_space<vmem>>, vector<1x8x64xf32>
    %164 = vector.shape_cast %163 : vector<1x8x64xf32> to vector<8x64xf32>
    %165 = tpu.concatenate %162, %164 in 1 : vector<8x64xf32>, vector<8x64xf32> -> vector<8x128xf32>
    %c192 = arith.constant 192 : index
    %c0_171 = arith.constant 0 : index
    %166 = vector.load %arg8[%c192, %c0_171] : memref<312x128xf32, #tpu.memory_space<vmem>>, vector<8x128xf32>
    tpu.vector_store %arg8[%c192, %c0_171], %165 {strides = array<i32>} : memref<312x128xf32, #tpu.memory_space<vmem>>, vector<8x128xf32>,
    %c0_172 = arith.constant 0 : index
    %c0_173 = arith.constant 0 : index
    %c25 = arith.constant 25 : index
    %167 = vector.load %arg7[%c0_172, %c0_173, %c25] : memref<2x8x102xf32, #tpu.memory_space<vmem>>, vector<1x8x64xf32>
    %168 = vector.shape_cast %167 : vector<1x8x64xf32> to vector<8x64xf32>
    %c1_174 = arith.constant 1 : index
    %c0_175 = arith.constant 0 : index
    %c25_176 = arith.constant 25 : index
    %169 = vector.load %arg7[%c1_174, %c0_175, %c25_176] : memref<2x8x102xf32, #tpu.memory_space<vmem>>, vector<1x8x64xf32>
    %170 = vector.shape_cast %169 : vector<1x8x64xf32> to vector<8x64xf32>
    %171 = tpu.concatenate %168, %170 in 1 : vector<8x64xf32>, vector<8x64xf32> -> vector<8x128xf32>
    %c200 = arith.constant 200 : index
    %c0_177 = arith.constant 0 : index
    %172 = vector.load %arg8[%c200, %c0_177] : memref<312x128xf32, #tpu.memory_space<vmem>>, vector<8x128xf32>
    tpu.vector_store %arg8[%c200, %c0_177], %171 {strides = array<i32>} : memref<312x128xf32, #tpu.memory_space<vmem>>, vector<8x128xf32>,
    %c0_178 = arith.constant 0 : index
    %c0_179 = arith.constant 0 : index
    %c26 = arith.constant 26 : index
    %173 = vector.load %arg7[%c0_178, %c0_179, %c26] : memref<2x8x102xf32, #tpu.memory_space<vmem>>, vector<1x8x64xf32>
    %174 = vector.shape_cast %173 : vector<1x8x64xf32> to vector<8x64xf32>
    %c1_180 = arith.constant 1 : index
    %c0_181 = arith.constant 0 : index
    %c26_182 = arith.constant 26 : index
    %175 = vector.load %arg7[%c1_180, %c0_181, %c26_182] : memref<2x8x102xf32, #tpu.memory_space<vmem>>, vector<1x8x64xf32>
    %176 = vector.shape_cast %175 : vector<1x8x64xf32> to vector<8x64xf32>
    %177 = tpu.concatenate %174, %176 in 1 : vector<8x64xf32>, vector<8x64xf32> -> vector<8x128xf32>
    %c208 = arith.constant 208 : index
    %c0_183 = arith.constant 0 : index
    %178 = vector.load %arg8[%c208, %c0_183] : memref<312x128xf32, #tpu.memory_space<vmem>>, vector<8x128xf32>
    tpu.vector_store %arg8[%c208, %c0_183], %177 {strides = array<i32>} : memref<312x128xf32, #tpu.memory_space<vmem>>, vector<8x128xf32>,
    %c0_184 = arith.constant 0 : index
    %c0_185 = arith.constant 0 : index
    %c27 = arith.constant 27 : index
    %179 = vector.load %arg7[%c0_184, %c0_185, %c27] : memref<2x8x102xf32, #tpu.memory_space<vmem>>, vector<1x8x64xf32>
    %180 = vector.shape_cast %179 : vector<1x8x64xf32> to vector<8x64xf32>
    %c1_186 = arith.constant 1 : index
    %c0_187 = arith.constant 0 : index
    %c27_188 = arith.constant 27 : index
    %181 = vector.load %arg7[%c1_186, %c0_187, %c27_188] : memref<2x8x102xf32, #tpu.memory_space<vmem>>, vector<1x8x64xf32>
    %182 = vector.shape_cast %181 : vector<1x8x64xf32> to vector<8x64xf32>
    %183 = tpu.concatenate %180, %182 in 1 : vector<8x64xf32>, vector<8x64xf32> -> vector<8x128xf32>
    %c216 = arith.constant 216 : index
    %c0_189 = arith.constant 0 : index
    %184 = vector.load %arg8[%c216, %c0_189] : memref<312x128xf32, #tpu.memory_space<vmem>>, vector<8x128xf32>
    tpu.vector_store %arg8[%c216, %c0_189], %183 {strides = array<i32>} : memref<312x128xf32, #tpu.memory_space<vmem>>, vector<8x128xf32>,
    %c0_190 = arith.constant 0 : index
    %c0_191 = arith.constant 0 : index
    %c28 = arith.constant 28 : index
    %185 = vector.load %arg7[%c0_190, %c0_191, %c28] : memref<2x8x102xf32, #tpu.memory_space<vmem>>, vector<1x8x64xf32>
    %186 = vector.shape_cast %185 : vector<1x8x64xf32> to vector<8x64xf32>
    %c1_192 = arith.constant 1 : index
    %c0_193 = arith.constant 0 : index
    %c28_194 = arith.constant 28 : index
    %187 = vector.load %arg7[%c1_192, %c0_193, %c28_194] : memref<2x8x102xf32, #tpu.memory_space<vmem>>, vector<1x8x64xf32>
    %188 = vector.shape_cast %187 : vector<1x8x64xf32> to vector<8x64xf32>
    %189 = tpu.concatenate %186, %188 in 1 : vector<8x64xf32>, vector<8x64xf32> -> vector<8x128xf32>
    %c224 = arith.constant 224 : index
    %c0_195 = arith.constant 0 : index
    %190 = vector.load %arg8[%c224, %c0_195] : memref<312x128xf32, #tpu.memory_space<vmem>>, vector<8x128xf32>
    tpu.vector_store %arg8[%c224, %c0_195], %189 {strides = array<i32>} : memref<312x128xf32, #tpu.memory_space<vmem>>, vector<8x128xf32>,
    %c0_196 = arith.constant 0 : index
    %c0_197 = arith.constant 0 : index
    %c29 = arith.constant 29 : index
    %191 = vector.load %arg7[%c0_196, %c0_197, %c29] : memref<2x8x102xf32, #tpu.memory_space<vmem>>, vector<1x8x64xf32>
    %192 = vector.shape_cast %191 : vector<1x8x64xf32> to vector<8x64xf32>
    %c1_198 = arith.constant 1 : index
    %c0_199 = arith.constant 0 : index
    %c29_200 = arith.constant 29 : index
    %193 = vector.load %arg7[%c1_198, %c0_199, %c29_200] : memref<2x8x102xf32, #tpu.memory_space<vmem>>, vector<1x8x64xf32>
    %194 = vector.shape_cast %193 : vector<1x8x64xf32> to vector<8x64xf32>
    %195 = tpu.concatenate %192, %194 in 1 : vector<8x64xf32>, vector<8x64xf32> -> vector<8x128xf32>
    %c232 = arith.constant 232 : index
    %c0_201 = arith.constant 0 : index
    %196 = vector.load %arg8[%c232, %c0_201] : memref<312x128xf32, #tpu.memory_space<vmem>>, vector<8x128xf32>
    tpu.vector_store %arg8[%c232, %c0_201], %195 {strides = array<i32>} : memref<312x128xf32, #tpu.memory_space<vmem>>, vector<8x128xf32>,
    %c0_202 = arith.constant 0 : index
    %c0_203 = arith.constant 0 : index
    %c30 = arith.constant 30 : index
    %197 = vector.load %arg7[%c0_202, %c0_203, %c30] : memref<2x8x102xf32, #tpu.memory_space<vmem>>, vector<1x8x64xf32>
    %198 = vector.shape_cast %197 : vector<1x8x64xf32> to vector<8x64xf32>
    %c1_204 = arith.constant 1 : index
    %c0_205 = arith.constant 0 : index
    %c30_206 = arith.constant 30 : index
    %199 = vector.load %arg7[%c1_204, %c0_205, %c30_206] : memref<2x8x102xf32, #tpu.memory_space<vmem>>, vector<1x8x64xf32>
    %200 = vector.shape_cast %199 : vector<1x8x64xf32> to vector<8x64xf32>
    %201 = tpu.concatenate %198, %200 in 1 : vector<8x64xf32>, vector<8x64xf32> -> vector<8x128xf32>
    %c240 = arith.constant 240 : index
    %c0_207 = arith.constant 0 : index
    %202 = vector.load %arg8[%c240, %c0_207] : memref<312x128xf32, #tpu.memory_space<vmem>>, vector<8x128xf32>
    tpu.vector_store %arg8[%c240, %c0_207], %201 {strides = array<i32>} : memref<312x128xf32, #tpu.memory_space<vmem>>, vector<8x128xf32>,
    %c0_208 = arith.constant 0 : index
    %c0_209 = arith.constant 0 : index
    %c31 = arith.constant 31 : index
    %203 = vector.load %arg7[%c0_208, %c0_209, %c31] : memref<2x8x102xf32, #tpu.memory_space<vmem>>, vector<1x8x64xf32>
    %204 = vector.shape_cast %203 : vector<1x8x64xf32> to vector<8x64xf32>
    %c1_210 = arith.constant 1 : index
    %c0_211 = arith.constant 0 : index
    %c31_212 = arith.constant 31 : index
    %205 = vector.load %arg7[%c1_210, %c0_211, %c31_212] : memref<2x8x102xf32, #tpu.memory_space<vmem>>, vector<1x8x64xf32>
    %206 = vector.shape_cast %205 : vector<1x8x64xf32> to vector<8x64xf32>
    %207 = tpu.concatenate %204, %206 in 1 : vector<8x64xf32>, vector<8x64xf32> -> vector<8x128xf32>
    %c248 = arith.constant 248 : index
    %c0_213 = arith.constant 0 : index
    %208 = vector.load %arg8[%c248, %c0_213] : memref<312x128xf32, #tpu.memory_space<vmem>>, vector<8x128xf32>
    tpu.vector_store %arg8[%c248, %c0_213], %207 {strides = array<i32>} : memref<312x128xf32, #tpu.memory_space<vmem>>, vector<8x128xf32>,
    %c0_214 = arith.constant 0 : index
    %c0_215 = arith.constant 0 : index
    %c32_216 = arith.constant 32 : index
    %209 = vector.load %arg7[%c0_214, %c0_215, %c32_216] : memref<2x8x102xf32, #tpu.memory_space<vmem>>, vector<1x8x64xf32>
    %210 = vector.shape_cast %209 : vector<1x8x64xf32> to vector<8x64xf32>
    %c1_217 = arith.constant 1 : index
    %c0_218 = arith.constant 0 : index
    %c32_219 = arith.constant 32 : index
    %211 = vector.load %arg7[%c1_217, %c0_218, %c32_219] : memref<2x8x102xf32, #tpu.memory_space<vmem>>, vector<1x8x64xf32>
    %212 = vector.shape_cast %211 : vector<1x8x64xf32> to vector<8x64xf32>
    %213 = tpu.concatenate %210, %212 in 1 : vector<8x64xf32>, vector<8x64xf32> -> vector<8x128xf32>
    %c256 = arith.constant 256 : index
    %c0_220 = arith.constant 0 : index
    %214 = vector.load %arg8[%c256, %c0_220] : memref<312x128xf32, #tpu.memory_space<vmem>>, vector<8x128xf32>
    tpu.vector_store %arg8[%c256, %c0_220], %213 {strides = array<i32>} : memref<312x128xf32, #tpu.memory_space<vmem>>, vector<8x128xf32>,
    %c0_221 = arith.constant 0 : index
    %c0_222 = arith.constant 0 : index
    %c33 = arith.constant 33 : index
    %215 = vector.load %arg7[%c0_221, %c0_222, %c33] : memref<2x8x102xf32, #tpu.memory_space<vmem>>, vector<1x8x64xf32>
    %216 = vector.shape_cast %215 : vector<1x8x64xf32> to vector<8x64xf32>
    %c1_223 = arith.constant 1 : index
    %c0_224 = arith.constant 0 : index
    %c33_225 = arith.constant 33 : index
    %217 = vector.load %arg7[%c1_223, %c0_224, %c33_225] : memref<2x8x102xf32, #tpu.memory_space<vmem>>, vector<1x8x64xf32>
    %218 = vector.shape_cast %217 : vector<1x8x64xf32> to vector<8x64xf32>
    %219 = tpu.concatenate %216, %218 in 1 : vector<8x64xf32>, vector<8x64xf32> -> vector<8x128xf32>
    %c264 = arith.constant 264 : index
    %c0_226 = arith.constant 0 : index
    %220 = vector.load %arg8[%c264, %c0_226] : memref<312x128xf32, #tpu.memory_space<vmem>>, vector<8x128xf32>
    tpu.vector_store %arg8[%c264, %c0_226], %219 {strides = array<i32>} : memref<312x128xf32, #tpu.memory_space<vmem>>, vector<8x128xf32>,
    %c0_227 = arith.constant 0 : index
    %c0_228 = arith.constant 0 : index
    %c34 = arith.constant 34 : index
    %221 = vector.load %arg7[%c0_227, %c0_228, %c34] : memref<2x8x102xf32, #tpu.memory_space<vmem>>, vector<1x8x64xf32>
    %222 = vector.shape_cast %221 : vector<1x8x64xf32> to vector<8x64xf32>
    %c1_229 = arith.constant 1 : index
    %c0_230 = arith.constant 0 : index
    %c34_231 = arith.constant 34 : index
    %223 = vector.load %arg7[%c1_229, %c0_230, %c34_231] : memref<2x8x102xf32, #tpu.memory_space<vmem>>, vector<1x8x64xf32>
    %224 = vector.shape_cast %223 : vector<1x8x64xf32> to vector<8x64xf32>
    %225 = tpu.concatenate %222, %224 in 1 : vector<8x64xf32>, vector<8x64xf32> -> vector<8x128xf32>
    %c272 = arith.constant 272 : index
    %c0_232 = arith.constant 0 : index
    %226 = vector.load %arg8[%c272, %c0_232] : memref<312x128xf32, #tpu.memory_space<vmem>>, vector<8x128xf32>
    tpu.vector_store %arg8[%c272, %c0_232], %225 {strides = array<i32>} : memref<312x128xf32, #tpu.memory_space<vmem>>, vector<8x128xf32>,
    %c0_233 = arith.constant 0 : index
    %c0_234 = arith.constant 0 : index
    %c35 = arith.constant 35 : index
    %227 = vector.load %arg7[%c0_233, %c0_234, %c35] : memref<2x8x102xf32, #tpu.memory_space<vmem>>, vector<1x8x64xf32>
    %228 = vector.shape_cast %227 : vector<1x8x64xf32> to vector<8x64xf32>
    %c1_235 = arith.constant 1 : index
    %c0_236 = arith.constant 0 : index
    %c35_237 = arith.constant 35 : index
    %229 = vector.load %arg7[%c1_235, %c0_236, %c35_237] : memref<2x8x102xf32, #tpu.memory_space<vmem>>, vector<1x8x64xf32>
    %230 = vector.shape_cast %229 : vector<1x8x64xf32> to vector<8x64xf32>
    %231 = tpu.concatenate %228, %230 in 1 : vector<8x64xf32>, vector<8x64xf32> -> vector<8x128xf32>
    %c280 = arith.constant 280 : index
    %c0_238 = arith.constant 0 : index
    %232 = vector.load %arg8[%c280, %c0_238] : memref<312x128xf32, #tpu.memory_space<vmem>>, vector<8x128xf32>
    tpu.vector_store %arg8[%c280, %c0_238], %231 {strides = array<i32>} : memref<312x128xf32, #tpu.memory_space<vmem>>, vector<8x128xf32>,
    %c0_239 = arith.constant 0 : index
    %c0_240 = arith.constant 0 : index
    %c36 = arith.constant 36 : index
    %233 = vector.load %arg7[%c0_239, %c0_240, %c36] : memref<2x8x102xf32, #tpu.memory_space<vmem>>, vector<1x8x64xf32>
    %234 = vector.shape_cast %233 : vector<1x8x64xf32> to vector<8x64xf32>
    %c1_241 = arith.constant 1 : index
    %c0_242 = arith.constant 0 : index
    %c36_243 = arith.constant 36 : index
    %235 = vector.load %arg7[%c1_241, %c0_242, %c36_243] : memref<2x8x102xf32, #tpu.memory_space<vmem>>, vector<1x8x64xf32>
    %236 = vector.shape_cast %235 : vector<1x8x64xf32> to vector<8x64xf32>
    %237 = tpu.concatenate %234, %236 in 1 : vector<8x64xf32>, vector<8x64xf32> -> vector<8x128xf32>
    %c288 = arith.constant 288 : index
    %c0_244 = arith.constant 0 : index
    %238 = vector.load %arg8[%c288, %c0_244] : memref<312x128xf32, #tpu.memory_space<vmem>>, vector<8x128xf32>
    tpu.vector_store %arg8[%c288, %c0_244], %237 {strides = array<i32>} : memref<312x128xf32, #tpu.memory_space<vmem>>, vector<8x128xf32>,
    %c0_245 = arith.constant 0 : index
    %c0_246 = arith.constant 0 : index
    %c37 = arith.constant 37 : index
    %239 = vector.load %arg7[%c0_245, %c0_246, %c37] : memref<2x8x102xf32, #tpu.memory_space<vmem>>, vector<1x8x64xf32>
    %240 = vector.shape_cast %239 : vector<1x8x64xf32> to vector<8x64xf32>
    %c1_247 = arith.constant 1 : index
    %c0_248 = arith.constant 0 : index
    %c37_249 = arith.constant 37 : index
    %241 = vector.load %arg7[%c1_247, %c0_248, %c37_249] : memref<2x8x102xf32, #tpu.memory_space<vmem>>, vector<1x8x64xf32>
    %242 = vector.shape_cast %241 : vector<1x8x64xf32> to vector<8x64xf32>
    %243 = tpu.concatenate %240, %242 in 1 : vector<8x64xf32>, vector<8x64xf32> -> vector<8x128xf32>
    %c296 = arith.constant 296 : index
    %c0_250 = arith.constant 0 : index
    %244 = vector.load %arg8[%c296, %c0_250] : memref<312x128xf32, #tpu.memory_space<vmem>>, vector<8x128xf32>
    tpu.vector_store %arg8[%c296, %c0_250], %243 {strides = array<i32>} : memref<312x128xf32, #tpu.memory_space<vmem>>, vector<8x128xf32>,
    %c0_251 = arith.constant 0 : index
    %c0_252 = arith.constant 0 : index
    %c38 = arith.constant 38 : index
    %245 = vector.load %arg7[%c0_251, %c0_252, %c38] : memref<2x8x102xf32, #tpu.memory_space<vmem>>, vector<1x8x64xf32>
    %246 = vector.shape_cast %245 : vector<1x8x64xf32> to vector<8x64xf32>
    %c1_253 = arith.constant 1 : index
    %c0_254 = arith.constant 0 : index
    %c38_255 = arith.constant 38 : index
    %247 = vector.load %arg7[%c1_253, %c0_254, %c38_255] : memref<2x8x102xf32, #tpu.memory_space<vmem>>, vector<1x8x64xf32>
    %248 = vector.shape_cast %247 : vector<1x8x64xf32> to vector<8x64xf32>
    %249 = tpu.concatenate %246, %248 in 1 : vector<8x64xf32>, vector<8x64xf32> -> vector<8x128xf32>
    %c304 = arith.constant 304 : index
    %c0_256 = arith.constant 0 : index
    %250 = vector.load %arg8[%c304, %c0_256] : memref<312x128xf32, #tpu.memory_space<vmem>>, vector<8x128xf32>
    tpu.vector_store %arg8[%c304, %c0_256], %249 {strides = array<i32>} : memref<312x128xf32, #tpu.memory_space<vmem>>, vector<8x128xf32>,
    %c0_257 = arith.constant 0 : index
    %c0_258 = arith.constant 0 : index
    %251 = vector.load %arg2[%c0_257, %c0_258] : memref<24x312xf32, #tpu.memory_space<vmem>>, vector<24x312xf32>
    %c0_259 = arith.constant 0 : index
    %c0_260 = arith.constant 0 : index
    %252 = vector.load %arg8[%c0_259, %c0_260] : memref<312x128xf32, #tpu.memory_space<vmem>>, vector<312x128xf32>
    %cst_261 = arith.constant dense<0.000000e+00> : vector<24x128xf32>
    %253 = tpu.matmul %251, %252, %cst_261 {dimension_numbers = #tpu.dot_dimension_numbers<[1], [0], [0], [1], [0, 0, 1, 1], [], []>} : vector<24x312xf32>, vector<312x128xf32>, vector<24x128xf32> -> vector<24x128xf32>
    %254 = tpu.iota {dimensions = array<i32: 1>} : vector<4x128xi32>
    %c64_i32 = arith.constant 64 : i32
    %c0_i32 = arith.constant 0 : i32
    %255 = arith.cmpi eq, %c64_i32, %c0_i32 : i32
    %c1_i32 = arith.constant 1 : i32
    %256 = arith.select %255, %c1_i32, %c64_i32 : i32
    %257 = vector.broadcast %256 : i32 to vector<4x128xi32>
    %258 = arith.remsi %254, %257 : vector<4x128xi32>
    %c0_i32_262 = arith.constant 0 : i32
    %259 = vector.broadcast %c0_i32_262 : i32 to vector<4x128xi32>
    %260 = arith.cmpi ne, %258, %259 : vector<4x128xi32>
    %c0_i32_263 = arith.constant 0 : i32
    %261 = vector.broadcast %c0_i32_263 : i32 to vector<4x128xi32>
    %262 = arith.cmpi slt, %258, %261 : vector<4x128xi32>
    %c0_i32_264 = arith.constant 0 : i32
    %263 = arith.cmpi slt, %256, %c0_i32_264 : i32
    %264 = vector.broadcast %263 : i1 to vector<4x128xi1>
    %265 = vector.broadcast %264 : vector<4x128xi1> to vector<4x128xi1>
    %266 = arith.xori %262, %265 : vector<4x128xi1>
    %267 = arith.andi %266, %260 : vector<4x128xi1>
    %268 = vector.broadcast %256 : i32 to vector<4x128xi32>
    %269 = arith.addi %258, %268 : vector<4x128xi32>
    %270 = arith.select %267, %269, %258 : vector<4x128xi1>, vector<4x128xi32>
    %271 = vector.extract_strided_slice %4 {offsets = [0, 0], sizes = [4, 1], strides = [1, 1]} : vector<4x128xf32> to vector<4x1xf32>
    %272 = vector.extract_strided_slice %4 {offsets = [0, 0], sizes = [4, 127], strides = [1, 1]} : vector<4x128xf32> to vector<4x127xf32>
    %273 = tpu.concatenate %271, %272 in 1 : vector<4x1xf32>, vector<4x127xf32> -> vector<4x128xf32>
    %274 = vector.extract_strided_slice %4 {offsets = [0, 1], sizes = [4, 127], strides = [1, 1]} : vector<4x128xf32> to vector<4x127xf32>
    %275 = vector.extract_strided_slice %4 {offsets = [0, 127], sizes = [4, 1], strides = [1, 1]} : vector<4x128xf32> to vector<4x1xf32>
    %276 = tpu.concatenate %274, %275 in 1 : vector<4x127xf32>, vector<4x1xf32> -> vector<4x128xf32>
    %c0_i32_265 = arith.constant 0 : i32
    %277 = vector.broadcast %c0_i32_265 : i32 to vector<4x128xi32>
    %278 = arith.cmpi eq, %270, %277 : vector<4x128xi32>
    %279 = arith.select %278, %4, %273 : vector<4x128xi1>, vector<4x128xf32>
    %c63_i32 = arith.constant 63 : i32
    %280 = vector.broadcast %c63_i32 : i32 to vector<4x128xi32>
    %281 = arith.cmpi eq, %270, %280 : vector<4x128xi32>
    %282 = arith.select %281, %4, %276 : vector<4x128xi1>, vector<4x128xf32>
    %283 = arith.maximumf %279, %4 : vector<4x128xf32>
    %284 = arith.maximumf %283, %282 : vector<4x128xf32>
    %c0_266 = arith.constant 0 : index
    %c0_267 = arith.constant 0 : index
    %285 = vector.load %arg3[%c0_266, %c0_267] : memref<8x4xf32, #tpu.memory_space<vmem>>, vector<8x4xf32>
    %cst_268 = arith.constant dense<0.000000e+00> : vector<8x128xf32>
    %286 = tpu.matmul %285, %284, %cst_268 {dimension_numbers = #tpu.dot_dimension_numbers<[1], [0], [0], [1], [0, 0, 1, 1], [], []>} : vector<8x4xf32>, vector<4x128xf32>, vector<8x128xf32> -> vector<8x128xf32>
    %c0_269 = arith.constant 0 : index
    %c0_270 = arith.constant 0 : index
    %287 = vector.load %arg4[%c0_269, %c0_270] : memref<32x1xf32, #tpu.memory_space<vmem>>, vector<24x1xf32>
    %c0_271 = arith.constant 0 : index
    %c0_272 = arith.constant 0 : index
    %288 = vector.load %arg5[%c0_271, %c0_272] : memref<32x1xf32, #tpu.memory_space<vmem>>, vector<24x1xf32>
    %cst_273 = arith.constant dense<0.000000e+00> : vector<24xf32>
    %289 = vector.multi_reduction <add>, %253, %cst_273 [1] : vector<24x128xf32> to vector<24xf32>
    %290 = vector.shape_cast %289 : vector<24xf32> to vector<24x1xf32>
    %cst_274 = arith.constant 7.812500e-03 : f32
    %291 = vector.broadcast %cst_274 : f32 to vector<24x1xf32>
    %292 = arith.mulf %290, %291 : vector<24x1xf32>
    %293 = vector.broadcast %292 : vector<24x1xf32> to vector<24x128xf32>
    %294 = arith.subf %253, %293 : vector<24x128xf32>
    %295 = arith.mulf %294, %294 : vector<24x128xf32>
    %cst_275 = arith.constant dense<0.000000e+00> : vector<24xf32>
    %296 = vector.multi_reduction <add>, %295, %cst_275 [1] : vector<24x128xf32> to vector<24xf32>
    %297 = vector.shape_cast %296 : vector<24xf32> to vector<24x1xf32>
    %cst_276 = arith.constant 7.812500e-03 : f32
    %298 = vector.broadcast %cst_276 : f32 to vector<24x1xf32>
    %299 = arith.mulf %297, %298 : vector<24x1xf32>
    %cst_277 = arith.constant 9.99999974E-6 : f32
    %300 = vector.broadcast %cst_277 : f32 to vector<24x1xf32>
    %301 = arith.addf %299, %300 : vector<24x1xf32>
    %302 = math.rsqrt %301 : vector<24x1xf32>
    %303 = vector.broadcast %302 : vector<24x1xf32> to vector<24x128xf32>
    %304 = arith.mulf %294, %303 : vector<24x128xf32>
    %305 = vector.broadcast %287 : vector<24x1xf32> to vector<24x128xf32>
    %306 = arith.mulf %304, %305 : vector<24x128xf32>
    %307 = vector.broadcast %288 : vector<24x1xf32> to vector<24x128xf32>
    %308 = arith.addf %306, %307 : vector<24x128xf32>
    %cst_278 = arith.constant 0.000000e+00 : f32
    %309 = vector.broadcast %cst_278 : f32 to vector<24x128xf32>
    %310 = arith.maximumf %308, %309 : vector<24x128xf32>
    %c0_279 = arith.constant 0 : index
    %c0_280 = arith.constant 0 : index
    %311 = vector.load %arg6[%c0_279, %c0_280] : memref<32x128xf32, #tpu.memory_space<vmem>>, vector<24x128xf32>
    tpu.vector_store %arg6[%c0_279, %c0_280], %310 {strides = array<i32>} : memref<32x128xf32, #tpu.memory_space<vmem>>, vector<24x128xf32>,
    %c24_281 = arith.constant 24 : index
    %c0_282 = arith.constant 0 : index
    %312 = vector.load %arg4[%c24_281, %c0_282] : memref<32x1xf32, #tpu.memory_space<vmem>>, vector<8x1xf32>
    %c24_283 = arith.constant 24 : index
    %c0_284 = arith.constant 0 : index
    %313 = vector.load %arg5[%c24_283, %c0_284] : memref<32x1xf32, #tpu.memory_space<vmem>>, vector<8x1xf32>
    %cst_285 = arith.constant dense<0.000000e+00> : vector<8xf32>
    %314 = vector.multi_reduction <add>, %286, %cst_285 [1] : vector<8x128xf32> to vector<8xf32>
    %315 = vector.shape_cast %314 : vector<8xf32> to vector<8x1xf32>
    %cst_286 = arith.constant 7.812500e-03 : f32
    %316 = vector.broadcast %cst_286 : f32 to vector<8x1xf32>
    %317 = arith.mulf %315, %316 : vector<8x1xf32>
    %318 = vector.broadcast %317 : vector<8x1xf32> to vector<8x128xf32>
    %319 = arith.subf %286, %318 : vector<8x128xf32>
    %320 = arith.mulf %319, %319 : vector<8x128xf32>
    %cst_287 = arith.constant dense<0.000000e+00> : vector<8xf32>
    %321 = vector.multi_reduction <add>, %320, %cst_287 [1] : vector<8x128xf32> to vector<8xf32>
    %322 = vector.shape_cast %321 : vector<8xf32> to vector<8x1xf32>
    %cst_288 = arith.constant 7.812500e-03 : f32
    %323 = vector.broadcast %cst_288 : f32 to vector<8x1xf32>
    %324 = arith.mulf %322, %323 : vector<8x1xf32>
    %cst_289 = arith.constant 9.99999974E-6 : f32
    %325 = vector.broadcast %cst_289 : f32 to vector<8x1xf32>
    %326 = arith.addf %324, %325 : vector<8x1xf32>
    %327 = math.rsqrt %326 : vector<8x1xf32>
    %328 = vector.broadcast %327 : vector<8x1xf32> to vector<8x128xf32>
    %329 = arith.mulf %319, %328 : vector<8x128xf32>
    %330 = vector.broadcast %312 : vector<8x1xf32> to vector<8x128xf32>
    %331 = arith.mulf %329, %330 : vector<8x128xf32>
    %332 = vector.broadcast %313 : vector<8x1xf32> to vector<8x128xf32>
    %333 = arith.addf %331, %332 : vector<8x128xf32>
    %cst_290 = arith.constant 0.000000e+00 : f32
    %334 = vector.broadcast %cst_290 : f32 to vector<8x128xf32>
    %335 = arith.maximumf %333, %334 : vector<8x128xf32>
    %c24_291 = arith.constant 24 : index
    %c0_292 = arith.constant 0 : index
    %336 = vector.load %arg6[%c24_291, %c0_292] : memref<32x128xf32, #tpu.memory_space<vmem>>, vector<8x128xf32>
    tpu.vector_store %arg6[%c24_291, %c0_292], %335 {strides = array<i32>} : memref<32x128xf32, #tpu.memory_space<vmem>>, vector<8x128xf32>,
    return
  }
}

</mosaic_0001>

<llo_original>
// kernel: inception_module.1
$region0: #{inception_module.1}
  #allocation0 [shape = 'u32[]', space=smem, size = 0x4, offset = 0x4, fixed_abs, tag = 'smem constant byte address 0x4 - core index']
  #allocation1 [shape = 'u32[72,128]{1,0:T(1,128)}', space=vmem, size = 0x9000, scoped, tag = 'internal scratch']
  #allocation2 [shape = 'f32[2,8,102]{2,1,0:T(8,128)}', space=vmem, size = 0x2000, scoped, tag = 'scratch operand']
  #allocation3 [shape = 'f32[312,128]{1,0:T(8,128)}', space=vmem, size = 0x27000, scoped, tag = 'scratch operand']
  %s0 = inlined_call_operand.vmem [shape: f32[2,4,64], index: 0, kind: input, shape index: {}]
  %s1 = inlined_call_operand.vmem [shape: f32[8,4], index: 1, kind: input, shape index: {}]
  %s2 = inlined_call_operand.vmem [shape: f32[24,312], index: 2, kind: input, shape index: {}]
  %s3 = inlined_call_operand.vmem [shape: f32[8,4], index: 3, kind: input, shape index: {}]
  %s4 = inlined_call_operand.vmem [shape: f32[32,1], index: 4, kind: input, shape index: {}]
  %s5 = inlined_call_operand.vmem [shape: f32[32,1], index: 5, kind: input, shape index: {}]
  %s6 = inlined_call_operand.vmem [shape: f32[32,128], index: 6, kind: output, shape index: {}]
  %s7 = sld [smem:[#allocation0]]
  $region34: #{inception_module.1} parent=0
    _
  %s9 = ssub.s32 1, %s7
  %s10 = scalar_select 0, %s9, %s7
  // Predicated region
  $region2: #{inception_module.1} parent=0 // pred_check
    _
  $region3: #{inception_module.1} parent=0 // pred_check_branch
    %12 = sbr.rel (0) target = $region5
  $region4: #{inception_module.1} parent=0 // pred_region
    _
  $region5: #{inception_module.1} parent=0 // pred_fallthru
    _
  // Predicated region
  $region6: #{inception_module.1} parent=0 // pred_check
    _
  $region7: #{inception_module.1} parent=0 // pred_check_branch
    %14 = sbr.rel (0) target = $region9
  $region8: #{inception_module.1} parent=0 // pred_region
    _
  $region9: #{inception_module.1} parent=0 // pred_fallthru
    _
  // Predicated region
  $region10: #{inception_module.1} parent=0 // pred_check
    _
  $region11: #{inception_module.1} parent=0 // pred_check_branch
    %16 = sbr.rel (0) target = $region13
  $region12: #{inception_module.1} parent=0 // pred_region
    _
  $region13: #{inception_module.1} parent=0 // pred_fallthru
    _
  // Predicated region
  $region14: #{inception_module.1} parent=0 // pred_check
    _
  $region15: #{inception_module.1} parent=0 // pred_check_branch
    %18 = sbr.rel (0) target = $region17
  $region16: #{inception_module.1} parent=0 // pred_region
    _
  $region17: #{inception_module.1} parent=0 // pred_fallthru
    _
  // Predicated region
  $region18: #{inception_module.1} parent=0 // pred_check
    _
  $region19: #{inception_module.1} parent=0 // pred_check_branch
    %20 = sbr.rel (0) target = $region21
  $region20: #{inception_module.1} parent=0 // pred_region
    _
  $region21: #{inception_module.1} parent=0 // pred_fallthru
    _
  // Predicated region
  $region22: #{inception_module.1} parent=0 // pred_check
    _
  $region23: #{inception_module.1} parent=0 // pred_check_branch
    %22 = sbr.rel (0) target = $region25
  $region24: #{inception_module.1} parent=0 // pred_region
    _
  $region25: #{inception_module.1} parent=0 // pred_fallthru
    _
  %v23 = vld [vmem:[%s0] sm:$0xf]
  %s24 = scalar_lea.vmem %s0, 4
  %v25 = vld [vmem:[%s24] sm:$0xf]
  %27 = vrot.lane.b32.xlu0 %v25, 64
  %v28 = vpop.permute.xlu0 %27
  %vm30 = vcmask 523264
  %v31 = vsel %vm30, %v23, %v28
  %v32 = vld [vmem:[%s1] sm:$0xff]
  %vm33 = vcmask 31744
  %v35 = vsel %vm33, %v32, 0
  %vm37 = vcmask 1043456
  %v39 = vsel %vm37, %v31, 0
  %41 = vmatpush.msra.mxu0 0.0
  %42 = vmatpush.msra.mxu0 0.0
  %43 = vmatpush.msra.mxu0 0.0
  %44 = vmatpush.msra.mxu0 0.0
  %45 = vmatpush.msra.mxu0 0.0
  %46 = vmatpush.msra.mxu0 0.0
  %47 = vmatpush.msra.mxu0 0.0
  %48 = vmatpush.msra.mxu0 0.0
  %49 = vmatpush.msra.mxu0 0.0
  %50 = vmatpush.msra.mxu0 0.0
  %51 = vmatpush.msra.mxu0 0.0
  %52 = vmatpush.msra.mxu0 0.0
  %53 = vmatpush.msra.mxu0 0.0
  %54 = vmatpush.msra.mxu0 0.0
  %55 = vmatpush.msra.mxu0 0.0
  %56 = vmatpush.msra.mxu0 %v39
  %57 = vmatmul.f32.gmra.mxu0 %v35
  %v58 = vpop.f32.mrf.mxu0
  %v59 = vadd.f32 0.0, %v58
  %60 = vdwg.mxu0
  %vm61 = vcmask 834560
  %62 = vst.msk [vmem:[#allocation2] sm:$0xff] %vm61, 0.0
  %63 = vst.msk [vmem:[#allocation2 + $0x8] sm:$0xff] %vm61, 0.0
  %65 = vrot.lane.b32.xlu0 %v59, 19
  %v66 = vpop.permute.xlu0 %65
  %vm68 = vcmask 679064
  %69 = vst.msk [vmem:[#allocation2] sm:$0xff] %vm68, %v66
  %70 = vrot.lane.b32.xlu0 %v59, 83
  %v71 = vpop.permute.xlu0 %70
  %s73 = scalar_lea.vmem [#allocation2], 8
  %74 = vst.msk [vmem:[%s73] sm:$0xff] %vm68, %v71
  %v75 = vld [vmem:[#allocation2] sm:$0xff]
  %v76 = vld [vmem:[%s73] sm:$0xff]
  %78 = vrot.lane.b32.xlu0 %v76, 64
  %v79 = vpop.permute.xlu0 %78
  %v81 = vsel %vm30, %v75, %v79
  %82 = vst [vmem:[#allocation3] sm:$0xff] %v81
  %v83 = vld [vmem:[#allocation2] sm:$0xff]
  %v84 = vld [vmem:[%s73] sm:$0xff]
  %86 = vrot.lane.b32.xlu0 %v83, 127
  %v87 = vpop.permute.xlu0 %86
  %90 = vrot.lane.b32.xlu0 %v84, 63
  %v91 = vpop.permute.xlu0 %90
  %v93 = vsel %vm30, %v87, %v91
  %94 = vst [vmem:[#allocation3 + $0x8] sm:$0xff] %v93
  %v95 = vld [vmem:[#allocation2] sm:$0xff]
  %v96 = vld [vmem:[%s73] sm:$0xff]
  %98 = vrot.lane.b32.xlu0 %v95, 126
  %v99 = vpop.permute.xlu0 %98
  %102 = vrot.lane.b32.xlu0 %v96, 62
  %v103 = vpop.permute.xlu0 %102
  %v105 = vsel %vm30, %v99, %v103
  %106 = vst [vmem:[#allocation3 + $0x10] sm:$0xff] %v105
  %v107 = vld [vmem:[#allocation2] sm:$0xff]
  %v108 = vld [vmem:[%s73] sm:$0xff]
  %110 = vrot.lane.b32.xlu0 %v107, 125
  %v111 = vpop.permute.xlu0 %110
  %114 = vrot.lane.b32.xlu0 %v108, 61
  %v115 = vpop.permute.xlu0 %114
  %v117 = vsel %vm30, %v111, %v115
  %118 = vst [vmem:[#allocation3 + $0x18] sm:$0xff] %v117
  %v119 = vld [vmem:[#allocation2] sm:$0xff]
  %v120 = vld [vmem:[%s73] sm:$0xff]
  %122 = vrot.lane.b32.xlu0 %v119, 124
  %v123 = vpop.permute.xlu0 %122
  %126 = vrot.lane.b32.xlu0 %v120, 60
  %v127 = vpop.permute.xlu0 %126
  %v129 = vsel %vm30, %v123, %v127
  %130 = vst [vmem:[#allocation3 + $0x20] sm:$0xff] %v129
  %v131 = vld [vmem:[#allocation2] sm:$0xff]
  %v132 = vld [vmem:[%s73] sm:$0xff]
  %134 = vrot.lane.b32.xlu0 %v131, 123
  %v135 = vpop.permute.xlu0 %134
  %138 = vrot.lane.b32.xlu0 %v132, 59
  %v139 = vpop.permute.xlu0 %138
  %v141 = vsel %vm30, %v135, %v139
  %142 = vst [vmem:[#allocation3 + $0x28] sm:$0xff] %v141
  %v143 = vld [vmem:[#allocation2] sm:$0xff]
  %v144 = vld [vmem:[%s73] sm:$0xff]
  %146 = vrot.lane.b32.xlu0 %v143, 122
  %v147 = vpop.permute.xlu0 %146
  %150 = vrot.lane.b32.xlu0 %v144, 58
  %v151 = vpop.permute.xlu0 %150
  %v153 = vsel %vm30, %v147, %v151
  %154 = vst [vmem:[#allocation3 + $0x30] sm:$0xff] %v153
  %v155 = vld [vmem:[#allocation2] sm:$0xff]
  %v156 = vld [vmem:[%s73] sm:$0xff]
  %158 = vrot.lane.b32.xlu0 %v155, 121
  %v159 = vpop.permute.xlu0 %158
  %162 = vrot.lane.b32.xlu0 %v156, 57
  %v163 = vpop.permute.xlu0 %162
  %v165 = vsel %vm30, %v159, %v163
  %166 = vst [vmem:[#allocation3 + $0x38] sm:$0xff] %v165
  %v167 = vld [vmem:[#allocation2] sm:$0xff]
  %v168 = vld [vmem:[%s73] sm:$0xff]
  %170 = vrot.lane.b32.xlu0 %v167, 120
  %v171 = vpop.permute.xlu0 %170
  %174 = vrot.lane.b32.xlu0 %v168, 56
  %v175 = vpop.permute.xlu0 %174
  %v177 = vsel %vm30, %v171, %v175
  %178 = vst [vmem:[#allocation3 + $0x40] sm:$0xff] %v177
  %v179 = vld [vmem:[#allocation2] sm:$0xff]
  %v180 = vld [vmem:[%s73] sm:$0xff]
  %182 = vrot.lane.b32.xlu0 %v179, 119
  %v183 = vpop.permute.xlu0 %182
  %186 = vrot.lane.b32.xlu0 %v180, 55
  %v187 = vpop.permute.xlu0 %186
  %v189 = vsel %vm30, %v183, %v187
  %190 = vst [vmem:[#allocation3 + $0x48] sm:$0xff] %v189
  %v191 = vld [vmem:[#allocation2] sm:$0xff]
  %v192 = vld [vmem:[%s73] sm:$0xff]
  %194 = vrot.lane.b32.xlu0 %v191, 118
  %v195 = vpop.permute.xlu0 %194
  %198 = vrot.lane.b32.xlu0 %v192, 54
  %v199 = vpop.permute.xlu0 %198
  %v201 = vsel %vm30, %v195, %v199
  %202 = vst [vmem:[#allocation3 + $0x50] sm:$0xff] %v201
  %v203 = vld [vmem:[#allocation2] sm:$0xff]
  %v204 = vld [vmem:[%s73] sm:$0xff]
  %206 = vrot.lane.b32.xlu0 %v203, 117
  %v207 = vpop.permute.xlu0 %206
  %210 = vrot.lane.b32.xlu0 %v204, 53
  %v211 = vpop.permute.xlu0 %210
  %v213 = vsel %vm30, %v207, %v211
  %214 = vst [vmem:[#allocation3 + $0x58] sm:$0xff] %v213
  %v215 = vld [vmem:[#allocation2] sm:$0xff]
  %v216 = vld [vmem:[%s73] sm:$0xff]
  %218 = vrot.lane.b32.xlu0 %v215, 116
  %v219 = vpop.permute.xlu0 %218
  %222 = vrot.lane.b32.xlu0 %v216, 52
  %v223 = vpop.permute.xlu0 %222
  %v225 = vsel %vm30, %v219, %v223
  %226 = vst [vmem:[#allocation3 + $0x60] sm:$0xff] %v225
  %v227 = vld [vmem:[#allocation2] sm:$0xff]
  %v228 = vld [vmem:[%s73] sm:$0xff]
  %230 = vrot.lane.b32.xlu0 %v227, 115
  %v231 = vpop.permute.xlu0 %230
  %234 = vrot.lane.b32.xlu0 %v228, 51
  %v235 = vpop.permute.xlu0 %234
  %v237 = vsel %vm30, %v231, %v235
  %238 = vst [vmem:[#allocation3 + $0x68] sm:$0xff] %v237
  %v239 = vld [vmem:[#allocation2] sm:$0xff]
  %v240 = vld [vmem:[%s73] sm:$0xff]
  %242 = vrot.lane.b32.xlu0 %v239, 114
  %v243 = vpop.permute.xlu0 %242
  %246 = vrot.lane.b32.xlu0 %v240, 50
  %v247 = vpop.permute.xlu0 %246
  %v249 = vsel %vm30, %v243, %v247
  %250 = vst [vmem:[#allocation3 + $0x70] sm:$0xff] %v249
  %v251 = vld [vmem:[#allocation2] sm:$0xff]
  %v252 = vld [vmem:[%s73] sm:$0xff]
  %254 = vrot.lane.b32.xlu0 %v251, 113
  %v255 = vpop.permute.xlu0 %254
  %258 = vrot.lane.b32.xlu0 %v252, 49
  %v259 = vpop.permute.xlu0 %258
  %v261 = vsel %vm30, %v255, %v259
  %262 = vst [vmem:[#allocation3 + $0x78] sm:$0xff] %v261
  %v263 = vld [vmem:[#allocation2] sm:$0xff]
  %v264 = vld [vmem:[%s73] sm:$0xff]
  %266 = vrot.lane.b32.xlu0 %v263, 112
  %v267 = vpop.permute.xlu0 %266
  %270 = vrot.lane.b32.xlu0 %v264, 48
  %v271 = vpop.permute.xlu0 %270
  %v273 = vsel %vm30, %v267, %v271
  %274 = vst [vmem:[#allocation3 + $0x80] sm:$0xff] %v273
  %v275 = vld [vmem:[#allocation2] sm:$0xff]
  %v276 = vld [vmem:[%s73] sm:$0xff]
  %278 = vrot.lane.b32.xlu0 %v275, 111
  %v279 = vpop.permute.xlu0 %278
  %282 = vrot.lane.b32.xlu0 %v276, 47
  %v283 = vpop.permute.xlu0 %282
  %v285 = vsel %vm30, %v279, %v283
  %286 = vst [vmem:[#allocation3 + $0x88] sm:$0xff] %v285
  %v287 = vld [vmem:[#allocation2] sm:$0xff]
  %v288 = vld [vmem:[%s73] sm:$0xff]
  %290 = vrot.lane.b32.xlu0 %v287, 110
  %v291 = vpop.permute.xlu0 %290
  %294 = vrot.lane.b32.xlu0 %v288, 46
  %v295 = vpop.permute.xlu0 %294
  %v297 = vsel %vm30, %v291, %v295
  %298 = vst [vmem:[#allocation3 + $0x90] sm:$0xff] %v297
  %v299 = vld [vmem:[#allocation2] sm:$0xff]
  %v300 = vld [vmem:[%s73] sm:$0xff]
  %302 = vrot.lane.b32.xlu0 %v299, 109
  %v303 = vpop.permute.xlu0 %302
  %306 = vrot.lane.b32.xlu0 %v300, 45
  %v307 = vpop.permute.xlu0 %306
  %v309 = vsel %vm30, %v303, %v307
  %310 = vst [vmem:[#allocation3 + $0x98] sm:$0xff] %v309
  %v311 = vld [vmem:[#allocation2] sm:$0xff]
  %v312 = vld [vmem:[%s73] sm:$0xff]
  %314 = vrot.lane.b32.xlu0 %v311, 108
  %v315 = vpop.permute.xlu0 %314
  %318 = vrot.lane.b32.xlu0 %v312, 44
  %v319 = vpop.permute.xlu0 %318
  %v321 = vsel %vm30, %v315, %v319
  %322 = vst [vmem:[#allocation3 + $0xa0] sm:$0xff] %v321
  %v323 = vld [vmem:[#allocation2] sm:$0xff]
  %v324 = vld [vmem:[%s73] sm:$0xff]
  %326 = vrot.lane.b32.xlu0 %v323, 107
  %v327 = vpop.permute.xlu0 %326
  %330 = vrot.lane.b32.xlu0 %v324, 43
  %v331 = vpop.permute.xlu0 %330
  %v333 = vsel %vm30, %v327, %v331
  %334 = vst [vmem:[#allocation3 + $0xa8] sm:$0xff] %v333
  %v335 = vld [vmem:[#allocation2] sm:$0xff]
  %v336 = vld [vmem:[%s73] sm:$0xff]
  %338 = vrot.lane.b32.xlu0 %v335, 106
  %v339 = vpop.permute.xlu0 %338
  %342 = vrot.lane.b32.xlu0 %v336, 42
  %v343 = vpop.permute.xlu0 %342
  %v345 = vsel %vm30, %v339, %v343
  %346 = vst [vmem:[#allocation3 + $0xb0] sm:$0xff] %v345
  %v347 = vld [vmem:[#allocation2] sm:$0xff]
  %v348 = vld [vmem:[%s73] sm:$0xff]
  %350 = vrot.lane.b32.xlu0 %v347, 105
  %v351 = vpop.permute.xlu0 %350
  %354 = vrot.lane.b32.xlu0 %v348, 41
  %v355 = vpop.permute.xlu0 %354
  %v357 = vsel %vm30, %v351, %v355
  %358 = vst [vmem:[#allocation3 + $0xb8] sm:$0xff] %v357
  %v359 = vld [vmem:[#allocation2] sm:$0xff]
  %v360 = vld [vmem:[%s73] sm:$0xff]
  %362 = vrot.lane.b32.xlu0 %v359, 104
  %v363 = vpop.permute.xlu0 %362
  %366 = vrot.lane.b32.xlu0 %v360, 40
  %v367 = vpop.permute.xlu0 %366
  %v369 = vsel %vm30, %v363, %v367
  %370 = vst [vmem:[#allocation3 + $0xc0] sm:$0xff] %v369
  %v371 = vld [vmem:[#allocation2] sm:$0xff]
  %v372 = vld [vmem:[%s73] sm:$0xff]
  %374 = vrot.lane.b32.xlu0 %v371, 103
  %v375 = vpop.permute.xlu0 %374
  %378 = vrot.lane.b32.xlu0 %v372, 39
  %v379 = vpop.permute.xlu0 %378
  %v381 = vsel %vm30, %v375, %v379
  %382 = vst [vmem:[#allocation3 + $0xc8] sm:$0xff] %v381
  %v383 = vld [vmem:[#allocation2] sm:$0xff]
  %v384 = vld [vmem:[%s73] sm:$0xff]
  %386 = vrot.lane.b32.xlu0 %v383, 102
  %v387 = vpop.permute.xlu0 %386
  %390 = vrot.lane.b32.xlu0 %v384, 38
  %v391 = vpop.permute.xlu0 %390
  %v393 = vsel %vm30, %v387, %v391
  %394 = vst [vmem:[#allocation3 + $0xd0] sm:$0xff] %v393
  %v395 = vld [vmem:[#allocation2] sm:$0xff]
  %v396 = vld [vmem:[%s73] sm:$0xff]
  %398 = vrot.lane.b32.xlu0 %v395, 101
  %v399 = vpop.permute.xlu0 %398
  %402 = vrot.lane.b32.xlu0 %v396, 37
  %v403 = vpop.permute.xlu0 %402
  %v405 = vsel %vm30, %v399, %v403
  %406 = vst [vmem:[#allocation3 + $0xd8] sm:$0xff] %v405
  %v407 = vld [vmem:[#allocation2] sm:$0xff]
  %v408 = vld [vmem:[%s73] sm:$0xff]
  %410 = vrot.lane.b32.xlu0 %v407, 100
  %v411 = vpop.permute.xlu0 %410
  %414 = vrot.lane.b32.xlu0 %v408, 36
  %v415 = vpop.permute.xlu0 %414
  %v417 = vsel %vm30, %v411, %v415
  %418 = vst [vmem:[#allocation3 + $0xe0] sm:$0xff] %v417
  %v419 = vld [vmem:[#allocation2] sm:$0xff]
  %v420 = vld [vmem:[%s73] sm:$0xff]
  %422 = vrot.lane.b32.xlu0 %v419, 99
  %v423 = vpop.permute.xlu0 %422
  %426 = vrot.lane.b32.xlu0 %v420, 35
  %v427 = vpop.permute.xlu0 %426
  %v429 = vsel %vm30, %v423, %v427
  %430 = vst [vmem:[#allocation3 + $0xe8] sm:$0xff] %v429
  %v431 = vld [vmem:[#allocation2] sm:$0xff]
  %v432 = vld [vmem:[%s73] sm:$0xff]
  %434 = vrot.lane.b32.xlu0 %v431, 98
  %v435 = vpop.permute.xlu0 %434
  %438 = vrot.lane.b32.xlu0 %v432, 34
  %v439 = vpop.permute.xlu0 %438
  %v441 = vsel %vm30, %v435, %v439
  %442 = vst [vmem:[#allocation3 + $0xf0] sm:$0xff] %v441
  %v443 = vld [vmem:[#allocation2] sm:$0xff]
  %v444 = vld [vmem:[%s73] sm:$0xff]
  %446 = vrot.lane.b32.xlu0 %v443, 97
  %v447 = vpop.permute.xlu0 %446
  %450 = vrot.lane.b32.xlu0 %v444, 33
  %v451 = vpop.permute.xlu0 %450
  %v453 = vsel %vm30, %v447, %v451
  %454 = vst [vmem:[#allocation3 + $0xf8] sm:$0xff] %v453
  %v455 = vld [vmem:[#allocation2] sm:$0xff]
  %v456 = vld [vmem:[%s73] sm:$0xff]
  %458 = vrot.lane.b32.xlu0 %v455, 96
  %v459 = vpop.permute.xlu0 %458
  %462 = vrot.lane.b32.xlu0 %v456, 32
  %v463 = vpop.permute.xlu0 %462
  %v465 = vsel %vm30, %v459, %v463
  %466 = vst [vmem:[#allocation3 + $0x100] sm:$0xff] %v465
  %v467 = vld [vmem:[#allocation2] sm:$0xff]
  %v468 = vld [vmem:[%s73] sm:$0xff]
  %470 = vrot.lane.b32.xlu0 %v467, 95
  %v471 = vpop.permute.xlu0 %470
  %474 = vrot.lane.b32.xlu0 %v468, 31
  %v475 = vpop.permute.xlu0 %474
  %v477 = vsel %vm30, %v471, %v475
  %478 = vst [vmem:[#allocation3 + $0x108] sm:$0xff] %v477
  %v479 = vld [vmem:[#allocation2] sm:$0xff]
  %v480 = vld [vmem:[%s73] sm:$0xff]
  %482 = vrot.lane.b32.xlu0 %v479, 94
  %v483 = vpop.permute.xlu0 %482
  %486 = vrot.lane.b32.xlu0 %v480, 30
  %v487 = vpop.permute.xlu0 %486
  %v489 = vsel %vm30, %v483, %v487
  %490 = vst [vmem:[#allocation3 + $0x110] sm:$0xff] %v489
  %v491 = vld [vmem:[#allocation2] sm:$0xff]
  %v492 = vld [vmem:[%s73] sm:$0xff]
  %494 = vrot.lane.b32.xlu0 %v491, 93
  %v495 = vpop.permute.xlu0 %494
  %498 = vrot.lane.b32.xlu0 %v492, 29
  %v499 = vpop.permute.xlu0 %498
  %v501 = vsel %vm30, %v495, %v499
  %502 = vst [vmem:[#allocation3 + $0x118] sm:$0xff] %v501
  %v503 = vld [vmem:[#allocation2] sm:$0xff]
  %v504 = vld [vmem:[%s73] sm:$0xff]
  %506 = vrot.lane.b32.xlu0 %v503, 92
  %v507 = vpop.permute.xlu0 %506
  %510 = vrot.lane.b32.xlu0 %v504, 28
  %v511 = vpop.permute.xlu0 %510
  %v513 = vsel %vm30, %v507, %v511
  %514 = vst [vmem:[#allocation3 + $0x120] sm:$0xff] %v513
  %v515 = vld [vmem:[#allocation2] sm:$0xff]
  %v516 = vld [vmem:[%s73] sm:$0xff]
  %518 = vrot.lane.b32.xlu0 %v515, 91
  %v519 = vpop.permute.xlu0 %518
  %522 = vrot.lane.b32.xlu0 %v516, 27
  %v523 = vpop.permute.xlu0 %522
  %v525 = vsel %vm30, %v519, %v523
  %526 = vst [vmem:[#allocation3 + $0x128] sm:$0xff] %v525
  %v527 = vld [vmem:[#allocation2] sm:$0xff]
  %v528 = vld [vmem:[%s73] sm:$0xff]
  %530 = vrot.lane.b32.xlu0 %v527, 90
  %v531 = vpop.permute.xlu0 %530
  %534 = vrot.lane.b32.xlu0 %v528, 26
  %v535 = vpop.permute.xlu0 %534
  %v537 = vsel %vm30, %v531, %v535
  %538 = vst [vmem:[#allocation3 + $0x130] sm:$0xff] %v537
  %v539 = vld [vmem:[%s2] sm:$0xff]
  %v540 = vld [vmem:[%s2 + $0x8] sm:$0xff]
  %v541 = vld [vmem:[%s2 + $0x10] sm:$0xff]
  %v542 = vld [vmem:[%s2 + $0x18] sm:$0xff]
  %v543 = vld [vmem:[%s2 + $0x20] sm:$0xff]
  %v544 = vld [vmem:[%s2 + $0x28] sm:$0xff]
  %v545 = vld [vmem:[%s2 + $0x30] sm:$0xff]
  %v546 = vld [vmem:[%s2 + $0x38] sm:$0xff]
  %v547 = vld [vmem:[%s2 + $0x40] sm:$0xff]
  %v548 = vld [vmem:[#allocation3] sm:$0xff]
  %v549 = vld [vmem:[#allocation3 + $0x8] sm:$0xff]
  %v550 = vld [vmem:[#allocation3 + $0x10] sm:$0xff]
  %v551 = vld [vmem:[#allocation3 + $0x18] sm:$0xff]
  %v552 = vld [vmem:[#allocation3 + $0x20] sm:$0xff]
  %v553 = vld [vmem:[#allocation3 + $0x28] sm:$0xff]
  %v554 = vld [vmem:[#allocation3 + $0x30] sm:$0xff]
  %v555 = vld [vmem:[#allocation3 + $0x38] sm:$0xff]
  %v556 = vld [vmem:[#allocation3 + $0x40] sm:$0xff]
  %v557 = vld [vmem:[#allocation3 + $0x48] sm:$0xff]
  %v558 = vld [vmem:[#allocation3 + $0x50] sm:$0xff]
  %v559 = vld [vmem:[#allocation3 + $0x58] sm:$0xff]
  %v560 = vld [vmem:[#allocation3 + $0x60] sm:$0xff]
  %v561 = vld [vmem:[#allocation3 + $0x68] sm:$0xff]
  %v562 = vld [vmem:[#allocation3 + $0x70] sm:$0xff]
  %v563 = vld [vmem:[#allocation3 + $0x78] sm:$0xff]
  %v564 = vld [vmem:[#allocation3 + $0x80] sm:$0xff]
  %v565 = vld [vmem:[#allocation3 + $0x88] sm:$0xff]
  %v566 = vld [vmem:[#allocation3 + $0x90] sm:$0xff]
  %v567 = vld [vmem:[#allocation3 + $0x98] sm:$0xff]
  %v568 = vld [vmem:[#allocation3 + $0xa0] sm:$0xff]
  %v569 = vld [vmem:[#allocation3 + $0xa8] sm:$0xff]
  %v570 = vld [vmem:[#allocation3 + $0xb0] sm:$0xff]
  %v571 = vld [vmem:[#allocation3 + $0xb8] sm:$0xff]
  %v572 = vld [vmem:[#allocation3 + $0xc0] sm:$0xff]
  %v573 = vld [vmem:[#allocation3 + $0xc8] sm:$0xff]
  %v574 = vld [vmem:[#allocation3 + $0xd0] sm:$0xff]
  %v575 = vld [vmem:[#allocation3 + $0xd8] sm:$0xff]
  %v576 = vld [vmem:[#allocation3 + $0xe0] sm:$0xff]
  %v577 = vld [vmem:[#allocation3 + $0xe8] sm:$0xff]
  %v578 = vld [vmem:[#allocation3 + $0xf0] sm:$0xff]
  %v579 = vld [vmem:[#allocation3 + $0xf8] sm:$0xff]
  %v580 = vld [vmem:[#allocation3 + $0x100] sm:$0xff]
  %v581 = vld [vmem:[#allocation3 + $0x108] sm:$0xff]
  %v582 = vld [vmem:[#allocation3 + $0x110] sm:$0xff]
  %v583 = vld [vmem:[#allocation3 + $0x118] sm:$0xff]
  %v584 = vld [vmem:[#allocation3 + $0x120] sm:$0xff]
  %v585 = vld [vmem:[#allocation3 + $0x128] sm:$0xff]
  %v586 = vld [vmem:[#allocation3 + $0x130] sm:$0xff]
  %vm587 = vcmask 457728
  %v589 = vsel %vm587, %v541, 0
  %v592 = vsel %vm587, %v544, 0
  %v595 = vsel %vm587, %v547, 0
  %597 = vmatpush.msra.mxu0 %v563
  %598 = vmatpush.msra.mxu0 %v562
  %599 = vmatpush.msra.mxu0 %v561
  %600 = vmatpush.msra.mxu0 %v560
  %601 = vmatpush.msra.mxu0 %v559
  %602 = vmatpush.msra.mxu0 %v558
  %603 = vmatpush.msra.mxu0 %v557
  %604 = vmatpush.msra.mxu0 %v556
  %605 = vmatpush.msra.mxu0 %v555
  %606 = vmatpush.msra.mxu0 %v554
  %607 = vmatpush.msra.mxu0 %v553
  %608 = vmatpush.msra.mxu0 %v552
  %609 = vmatpush.msra.mxu0 %v551
  %610 = vmatpush.msra.mxu0 %v550
  %611 = vmatpush.msra.mxu0 %v549
  %612 = vmatpush.msra.mxu0 %v548
  %613 = vmatmul.f32.gmra.mxu0 %v539
  %v614 = vpop.f32.mrf.mxu0
  %v615 = vadd.f32 0.0, %v614
  %616 = vmatmul.f32.gmra.mxu0 %v542
  %v617 = vpop.f32.mrf.mxu0
  %v618 = vadd.f32 0.0, %v617
  %619 = vmatmul.f32.gmra.mxu0 %v545
  %v620 = vpop.f32.mrf.mxu0
  %v621 = vadd.f32 0.0, %v620
  %622 = vdwg.mxu0
  %623 = vmatpush.msra.mxu0 %v579
  %624 = vmatpush.msra.mxu0 %v578
  %625 = vmatpush.msra.mxu0 %v577
  %626 = vmatpush.msra.mxu0 %v576
  %627 = vmatpush.msra.mxu0 %v575
  %628 = vmatpush.msra.mxu0 %v574
  %629 = vmatpush.msra.mxu0 %v573
  %630 = vmatpush.msra.mxu0 %v572
  %631 = vmatpush.msra.mxu0 %v571
  %632 = vmatpush.msra.mxu0 %v570
  %633 = vmatpush.msra.mxu0 %v569
  %634 = vmatpush.msra.mxu0 %v568
  %635 = vmatpush.msra.mxu0 %v567
  %636 = vmatpush.msra.mxu0 %v566
  %637 = vmatpush.msra.mxu0 %v565
  %638 = vmatpush.msra.mxu0 %v564
  %639 = vmatmul.f32.gmra.mxu0 %v540
  %v640 = vpop.f32.mrf.mxu0
  %v641 = vadd.f32 %v615, %v640
  %642 = vmatmul.f32.gmra.mxu0 %v543
  %v643 = vpop.f32.mrf.mxu0
  %v644 = vadd.f32 %v618, %v643
  %645 = vmatmul.f32.gmra.mxu0 %v546
  %v646 = vpop.f32.mrf.mxu0
  %v647 = vadd.f32 %v621, %v646
  %648 = vdwg.mxu0
  %649 = vmatpush.msra.mxu0 0.0
  %650 = vmatpush.msra.mxu0 0.0
  %651 = vmatpush.msra.mxu0 0.0
  %652 = vmatpush.msra.mxu0 0.0
  %653 = vmatpush.msra.mxu0 0.0
  %654 = vmatpush.msra.mxu0 0.0
  %655 = vmatpush.msra.mxu0 0.0
  %656 = vmatpush.msra.mxu0 0.0
  %657 = vmatpush.msra.mxu0 0.0
  %658 = vmatpush.msra.mxu0 %v586
  %659 = vmatpush.msra.mxu0 %v585
  %660 = vmatpush.msra.mxu0 %v584
  %661 = vmatpush.msra.mxu0 %v583
  %662 = vmatpush.msra.mxu0 %v582
  %663 = vmatpush.msra.mxu0 %v581
  %664 = vmatpush.msra.mxu0 %v580
  %665 = vmatmul.f32.gmra.mxu0 %v589
  %v666 = vpop.f32.mrf.mxu0
  %v667 = vadd.f32 %v641, %v666
  %668 = vmatmul.f32.gmra.mxu0 %v592
  %v669 = vpop.f32.mrf.mxu0
  %v670 = vadd.f32 %v644, %v669
  %671 = vmatmul.f32.gmra.mxu0 %v595
  %v672 = vpop.f32.mrf.mxu0
  %v673 = vadd.f32 %v647, %v672
  %674 = vdwg.mxu0
  %v675 = vlaneseq
  %v676 = vand.u32 %v675, 127
  %vm677 = vcmp.lt.s32.totalorder %v676, 0
  %v678 = vsub.s32 0, %v676
  %v679 = vsel %vm677, %v678, %v676
  %v680 = vshrl.u32 %v679, 6
  %v681 = vand.u32 %v679, 63
  %v682 = vsub.s32 0, %v681
  %v683 = vsel %vm677, %v682, %v681
  %vm684 = vcmp.ne.s32.totalorder %v683, 0
  %vm685 = vcmp.lt.s32.totalorder %v683, 0
  %vm686 = vmand %vm685, %vm684
  %v687 = vadd.s32 %v683, 64
  %v688 = vsel %vm686, %v687, %v683
  %689 = vrot.lane.b32.xlu0 %v31, 1
  %v690 = vpop.permute.xlu0 %689
  %vm692 = vcmask 7168
  %v693 = vsel %vm692, %v31, %v690
  %694 = vrot.lane.b32.xlu0 %v31, 127
  %v695 = vpop.permute.xlu0 %694
  %vm697 = vcmask 1039360
  %v698 = vsel %vm697, %v695, %v31
  %vm699 = vcmp.eq.s32.totalorder %v688, 0
  %v700 = vsel %vm699, %v31, %v693
  %vm701 = vcmp.eq.s32.totalorder %v688, 63
  %v702 = vsel %vm701, %v31, %v698
  %v703 = vmax.f32 %v700, %v31
  %v704 = vmax.f32 %v703, %v702
  %v705 = vld [vmem:[%s3] sm:$0xff]
  %v707 = vsel %vm33, %v705, 0
  %v710 = vsel %vm37, %v704, 0
  %712 = vmatpush.msra.mxu0 0.0
  %713 = vmatpush.msra.mxu0 0.0
  %714 = vmatpush.msra.mxu0 0.0
  %715 = vmatpush.msra.mxu0 0.0
  %716 = vmatpush.msra.mxu0 0.0
  %717 = vmatpush.msra.mxu0 0.0
  %718 = vmatpush.msra.mxu0 0.0
  %719 = vmatpush.msra.mxu0 0.0
  %720 = vmatpush.msra.mxu0 0.0
  %721 = vmatpush.msra.mxu0 0.0
  %722 = vmatpush.msra.mxu0 0.0
  %723 = vmatpush.msra.mxu0 0.0
  %724 = vmatpush.msra.mxu0 0.0
  %725 = vmatpush.msra.mxu0 0.0
  %726 = vmatpush.msra.mxu0 0.0
  %727 = vmatpush.msra.mxu0 %v710
  %728 = vmatmul.f32.gmra.mxu0 %v707
  %v729 = vpop.f32.mrf.mxu0
  %v730 = vadd.f32 0.0, %v729
  %731 = vdwg.mxu0
  %v732 = vld [vmem:[%s4] sm:$0xff]
  %v733 = vld [vmem:[%s4 + $0x8] sm:$0xff]
  %v734 = vld [vmem:[%s4 + $0x10] sm:$0xff]
  %v735 = vld [vmem:[%s5] sm:$0xff]
  %v736 = vld [vmem:[%s5 + $0x8] sm:$0xff]
  %v737 = vld [vmem:[%s5 + $0x10] sm:$0xff]
  %738 = vadd.xlane.f32.xlu0 %v667
  %v739 = vpop.xlane.xlu0 %738
  %740 = vadd.xlane.f32.xlu0 %v670
  %v741 = vpop.xlane.xlu0 %740
  %742 = vadd.xlane.f32.xlu0 %v673
  %v743 = vpop.xlane.xlu0 %742
  %v744 = vmul.f32 %v739, 0.0078125
  %v745 = vmul.f32 %v741, 0.0078125
  %v746 = vmul.f32 %v743, 0.0078125
  %v747 = vsub.f32 %v667, %v744
  %v748 = vsub.f32 %v670, %v745
  %v749 = vsub.f32 %v673, %v746
  %v750 = vmul.f32 %v747, %v747
  %v751 = vmul.f32 %v748, %v748
  %v752 = vmul.f32 %v749, %v749
  %753 = vadd.xlane.f32.xlu0 %v750
  %v754 = vpop.xlane.xlu0 %753
  %755 = vadd.xlane.f32.xlu0 %v751
  %v756 = vpop.xlane.xlu0 %755
  %757 = vadd.xlane.f32.xlu0 %v752
  %v758 = vpop.xlane.xlu0 %757
  %v759 = vmul.f32 %v754, 0.0078125
  %v760 = vmul.f32 %v756, 0.0078125
  %v761 = vmul.f32 %v758, 0.0078125
  %v762 = vadd.f32 %v759, 1e-05
  %v763 = vadd.f32 %v760, 1e-05
  %v764 = vadd.f32 %v761, 1e-05
  %v765 = vrsqrt.pop %v762
  %v766 = vmul.f32 %v765, %v762
  %v767 = vmul.f32 %v766, %v765
  %v768 = vmul.f32 0.5, %v767
  %v769 = vsub.f32 1.5, %v768
  %v770 = vmul.f32 %v765, %v769
  %vm771 = vweird.f32 %v762
  %vm772 = vweird.f32 %v765
  %vm773 = vmor %vm771, %vm772
  %v774 = vsel %vm773, %v765, %v770
  %v775 = vrsqrt.pop %v763
  %v776 = vmul.f32 %v775, %v763
  %v777 = vmul.f32 %v776, %v775
  %v778 = vmul.f32 0.5, %v777
  %v779 = vsub.f32 1.5, %v778
  %v780 = vmul.f32 %v775, %v779
  %vm781 = vweird.f32 %v763
  %vm782 = vweird.f32 %v775
  %vm783 = vmor %vm781, %vm782
  %v784 = vsel %vm783, %v775, %v780
  %v785 = vrsqrt.pop %v764
  %v786 = vmul.f32 %v785, %v764
  %v787 = vmul.f32 %v786, %v785
  %v788 = vmul.f32 0.5, %v787
  %v789 = vsub.f32 1.5, %v788
  %v790 = vmul.f32 %v785, %v789
  %vm791 = vweird.f32 %v764
  %vm792 = vweird.f32 %v785
  %vm793 = vmor %vm791, %vm792
  %v794 = vsel %vm793, %v785, %v790
  %v795 = vmul.f32 %v747, %v774
  %v796 = vmul.f32 %v748, %v784
  %v797 = vmul.f32 %v749, %v794
  %799 = vset.pattern.permute.xlu0 0
  %800 = vperm.xlu0 %799, %v732
  %v801 = vpop.permute.xlu0 %800
  %804 = vset.pattern.permute.xlu0 0
  %805 = vperm.xlu0 %804, %v733
  %v806 = vpop.permute.xlu0 %805
  %809 = vset.pattern.permute.xlu0 0
  %810 = vperm.xlu0 %809, %v734
  %v811 = vpop.permute.xlu0 %810
  %v813 = vmul.f32 %v795, %v801
  %v814 = vmul.f32 %v796, %v806
  %v815 = vmul.f32 %v797, %v811
  %817 = vset.pattern.permute.xlu0 0
  %818 = vperm.xlu0 %817, %v735
  %v819 = vpop.permute.xlu0 %818
  %822 = vset.pattern.permute.xlu0 0
  %823 = vperm.xlu0 %822, %v736
  %v824 = vpop.permute.xlu0 %823
  %827 = vset.pattern.permute.xlu0 0
  %828 = vperm.xlu0 %827, %v737
  %v829 = vpop.permute.xlu0 %828
  %v831 = vadd.f32 %v813, %v819
  %v832 = vadd.f32 %v814, %v824
  %v833 = vadd.f32 %v815, %v829
  %v834 = vmax.f32 %v831, 0.0
  %v835 = vmax.f32 %v832, 0.0
  %v836 = vmax.f32 %v833, 0.0
  %837 = vst [vmem:[%s6] sm:$0xff] %v834
  %838 = vst [vmem:[%s6 + $0x8] sm:$0xff] %v835
  %839 = vst [vmem:[%s6 + $0x10] sm:$0xff] %v836
  %v840 = vld [vmem:[%s4 + $0x18] sm:$0xff]
  %v841 = vld [vmem:[%s5 + $0x18] sm:$0xff]
  %842 = vadd.xlane.f32.xlu0 %v730
  %v843 = vpop.xlane.xlu0 %842
  %v844 = vmul.f32 %v843, 0.0078125
  %v845 = vsub.f32 %v730, %v844
  %v846 = vmul.f32 %v845, %v845
  %847 = vadd.xlane.f32.xlu0 %v846
  %v848 = vpop.xlane.xlu0 %847
  %v849 = vmul.f32 %v848, 0.0078125
  %v850 = vadd.f32 %v849, 1e-05
  %v851 = vrsqrt.pop %v850
  %v852 = vmul.f32 %v851, %v850
  %v853 = vmul.f32 %v852, %v851
  %v854 = vmul.f32 0.5, %v853
  %v855 = vsub.f32 1.5, %v854
  %v856 = vmul.f32 %v851, %v855
  %vm857 = vweird.f32 %v850
  %vm858 = vweird.f32 %v851
  %vm859 = vmor %vm857, %vm858
  %v860 = vsel %vm859, %v851, %v856
  %v861 = vmul.f32 %v845, %v860
  %863 = vset.pattern.permute.xlu0 0
  %864 = vperm.xlu0 %863, %v840
  %v865 = vpop.permute.xlu0 %864
  %v867 = vmul.f32 %v861, %v865
  %869 = vset.pattern.permute.xlu0 0
  %870 = vperm.xlu0 %869, %v841
  %v871 = vpop.permute.xlu0 %870
  %v873 = vadd.f32 %v867, %v871
  %v874 = vmax.f32 %v873, 0.0
  %875 = vst [vmem:[%s6 + $0x18] sm:$0xff] %v874
  // Predicated region
  $region26: #{inception_module.1} parent=0 // pred_check
    _
  $region27: #{inception_module.1} parent=0 // pred_check_branch
    %877 = sbr.rel (0) target = $region29
  $region28: #{inception_module.1} parent=0 // pred_region
    _
  $region29: #{inception_module.1} parent=0 // pred_fallthru
    _
  // Predicated region
  $region30: #{inception_module.1} parent=0 // pred_check
    _
  $region31: #{inception_module.1} parent=0 // pred_check_branch
    %879 = sbr.rel (0) target = $region33
  $region32: #{inception_module.1} parent=0 // pred_region
    _
  $region33: #{inception_module.1} parent=0 // pred_fallthru
    _

</llo_original>
